<compile_context>
chip_gen: v7x
topology: tpu7x:2x2x1
jax: 0.10.0
libtpu: 0.0.40
codegen_flags: <defaults>
</compile_context>

<pallas_src>
import functools

import jax
import jax.numpy as jnp
from jax import lax
from jax.experimental import pallas as pl
from jax.experimental.pallas import tpu as pltpu


def _round_up(x, m):
    return ((x + m - 1) // m) * m


def _pick_tile_b(batch, vocab_pad, n_ctx, dim, cap=512, budget=8 * 1024 * 1024):
    """Pick the batch tile (sublane axis, multiple of 8).

    Working set per batch row inside the kernel is dominated by the
    (tile_b, vocab_pad) logits / one-hot temporaries; index blocks are tiny.
    Also guarantee >= 2 grid tiles (when the batch allows) so the "parallel"
    grid axis can shard across both TensorCores on v7x.
    """
    per_row = 4 * (4 * vocab_pad + 2 * (n_ctx + 1) + 2 * dim)
    tb = max(8, min(cap, (budget // per_row) // 8 * 8))
    half = _round_up(max(1, (batch + 1) // 2), 8)
    return min(tb, half)


def _skipgram_loss_kernel(cw_ref, tw_ref, ow_ref, vt_ref, ut_ref, o_ref, *,
                          batch, tile_b, n_tgt, n_out, vocab_pad, dim):
    """Per-batch-tile partial sums for the skipgram softmax NLL loss.

    cw_ref : (tile_b, 1)       int32 center-word ids      (batch on sublanes)
    tw_ref : (tile_b, T)       int32 target-word ids
    ow_ref : (tile_b, W)       int32 out-word ids (normalizer samples)
    vt_ref : (D, vocab_pad)    resident V^T table (vocab on lanes)
    ut_ref : (D, vocab_pad)    resident U^T table (vocab on lanes)
    o_ref  : (1, 8, 128)       lane-dense partial sums:
                               row 0 -> sum_b lse_b, row 1 -> sum_{b,t} scores
    """
    i = pl.program_id(0)

    cw = cw_ref[...]                                    # (tile_b, 1)
    tw = tw_ref[...]                                    # (tile_b, T)
    ow = ow_ref[...]                                    # (tile_b, W)

    lane = lax.broadcasted_iota(jnp.int32, (tile_b, vocab_pad), 1)

    # ---- fused embedding gather + full-vocab logits (exact f32, VPU) ------
    # one-hot of the center word over the padded vocab lanes (exact 0/1).
    oh_c = (lane == cw).astype(jnp.float32)             # (tile_b, vocab_pad)

    # logits[b, j] = sum_d V[cw[b], d] * U[j, d], accumulated one embedding
    # dim at a time: v_d[b] = <oh_c[b], V[:, d]> (lane reduce on the XLU),
    # then outer-product accumulate with the U^T row. No MXU involved.
    logits = jnp.zeros((tile_b, vocab_pad), jnp.float32)
    for d in range(dim):
        vt_row = vt_ref[d:d + 1, :]                     # (1, vocab_pad) = V[:, d]
        ut_row = ut_ref[d:d + 1, :]                     # (1, vocab_pad) = U[:, d]
        v_d = jnp.sum(oh_c * vt_row, axis=1, keepdims=True)   # (tile_b, 1)
        logits = logits + v_d * ut_row                  # lane x sublane bcast

    # ---- pick the sampled columns via one-hot selects ----------------------
    def pick(idx_col):                                  # (tile_b, 1) int32
        hit = lane == idx_col
        return jnp.sum(jnp.where(hit, logits, 0.0), axis=1, keepdims=True)

    # stable max-subtracted LSE over the W normalizer (out_words) columns
    ns = [pick(ow[:, c:c + 1]) for c in range(n_out)]
    m = ns[0]
    for col in ns[1:]:
        m = jnp.maximum(m, col)
    ssum = jnp.zeros_like(m)
    for col in ns:
        ssum = ssum + jnp.exp(col - m)
    lse = m + jnp.log(ssum)                             # (tile_b, 1)

    # plain sum of the T target scores
    sc_sum = jnp.zeros_like(m)
    for c in range(n_tgt):
        sc_sum = sc_sum + pick(tw[:, c:c + 1])

    # ---- mask padded batch rows, reduce to per-tile partial sums -----------
    row = i * tile_b + lax.broadcasted_iota(jnp.int32, (tile_b, 1), 0)
    valid = row < batch
    lse_total = jnp.sum(jnp.where(valid, lse, 0.0))
    sc_total = jnp.sum(jnp.where(valid, sc_sum, 0.0))

    out_row = lax.broadcasted_iota(jnp.int32, (8, 128), 0)
    o_ref[0] = jnp.where(out_row == 0, lse_total,
                         jnp.where(out_row == 1, sc_total, 0.0))


@functools.partial(jax.jit, static_argnames=("tile_b",))
def skipgram_forward(V, U, center_words, target_words, out_words, *, tile_b=None):
    """Pallas-backed forward pass of the Skipgram module (returns scalar loss)."""
    B, T = target_words.shape
    W = out_words.shape[1]
    vocab, D = V.shape
    vocab_pad = _round_up(vocab, 128)

    # One-time tiny table prep (transpose so D sits on sublanes, lane-pad the
    # vocab).  This replaces the old per-call gather/concat/transpose/pad HBM
    # passes over the (B, T+W+1, D) embedding stream.
    vt = jnp.pad(V.astype(jnp.float32).T, ((0, 0), (0, vocab_pad - vocab)))
    ut = jnp.pad(U.astype(jnp.float32).T, ((0, 0), (0, vocab_pad - vocab)))

    if tile_b is None:
        tile_b = _pick_tile_b(B, vocab_pad, T + W, D)
    assert tile_b % 8 == 0, "batch tile must be a multiple of 8 (sublane unit)"
    num_tiles = -(-B // tile_b)
    b_pad = num_tiles * tile_b

    cw = center_words.astype(jnp.int32)
    tw = target_words.astype(jnp.int32)
    ow = out_words.astype(jnp.int32)
    if b_pad != B:
        pad = ((0, b_pad - B), (0, 0))      # padding int32 indices is ~free
        cw = jnp.pad(cw, pad)
        tw = jnp.pad(tw, pad)
        ow = jnp.pad(ow, pad)

    kernel = functools.partial(_skipgram_loss_kernel, batch=B, tile_b=tile_b,
                               n_tgt=T, n_out=W, vocab_pad=vocab_pad, dim=D)

    partials = pl.pallas_call(
        kernel,
        out_shape=jax.ShapeDtypeStruct((num_tiles, 8, 128), jnp.float32),
        grid=(num_tiles,),
        in_specs=[
            pl.BlockSpec((tile_b, 1), lambda i: (i, 0)),       # center ids
            pl.BlockSpec((tile_b, T), lambda i: (i, 0)),       # target ids
            pl.BlockSpec((tile_b, W), lambda i: (i, 0)),       # out ids
            pl.BlockSpec((D, vocab_pad), lambda i: (0, 0)),    # resident V^T
            pl.BlockSpec((D, vocab_pad), lambda i: (0, 0)),    # resident U^T
        ],
        out_specs=pl.BlockSpec((1, 8, 128), lambda i: (i, 0, 0)),
        compiler_params=pltpu.CompilerParams(
            dimension_semantics=("parallel",),
            vmem_limit_bytes=32 * 1024 * 1024),
    )(cw, tw, ow, vt, ut)

    lse_total = jnp.sum(partials[:, 0, 0])
    sc_total = jnp.sum(partials[:, 1, 0])
    # loss = mean_b lse_b - mean_{b,t} scores_{b,t}
    return lse_total / B - sc_total / (B * T)


def skipgram_reference(V, U, center_words, target_words, out_words):
    """Pure-JAX reference matching the PyTorch module exactly (exact f32)."""
    v = V[center_words[:, 0]].astype(jnp.float32)            # (B, D)
    u = U[target_words].astype(jnp.float32)                  # (B, T, D)
    ua = U[out_words].astype(jnp.float32)                     # (B, W, D)
    scores = jnp.sum(u * v[:, None, :], axis=-1)              # (B, T)
    norm_scores = jnp.sum(ua * v[:, None, :], axis=-1)        # (B, W)
    softmax = jnp.exp(scores) / jnp.sum(jnp.exp(norm_scores), axis=1, keepdims=True)
    return -jnp.mean(jnp.log(softmax))


if __name__ == "__main__":
    key = jax.random.PRNGKey(0)
    input_size, projection_size = 64, 32          # vocab size, embedding dim
    B, T, W = 8, 1, 16                            # batch, targets, out words

    (k_v, k_c, k_t, k_o, k_u2, k_v3, k_u3,
     k_c3, k_t3, k_o3) = jax.random.split(key, 10)

    # Module __init__: V.weight ~ U(-1, 1), U.weight = 0
    V = jax.random.uniform(k_v, (input_size, projection_size),
                           dtype=jnp.float32, minval=-1.0, maxval=1.0)
    U = jnp.zeros((input_size, projection_size), dtype=jnp.float32)

    center_words = jax.random.randint(k_c, (B, 1), 0, input_size)
    target_words = jax.random.randint(k_t, (B, T), 0, input_size)
    out_words = jax.random.randint(k_o, (B, W), 0, input_size)

    loss = jax.block_until_ready(
        skipgram_forward(V, U, center_words, target_words, out_words))
    ref = skipgram_reference(V, U, center_words, target_words, out_words)
    assert jnp.allclose(loss, ref, rtol=1e-5, atol=1e-5), (loss, ref)

    # Non-zero U table so the logits / LSE path is exercised.
    U2 = jax.random.uniform(k_u2, (input_size, projection_size),
                            dtype=jnp.float32, minval=-0.5, maxval=0.5)
    loss2 = jax.block_until_ready(
        skipgram_forward(V, U2, center_words, target_words, out_words))
    ref2 = skipgram_reference(V, U2, center_words, target_words, out_words)
    assert jnp.allclose(loss2, ref2, rtol=1e-5, atol=1e-5), (loss2, ref2)

    # Multi-tile grid + batch padding/masking path + vocab that is not a
    # multiple of 128 (forced small batch tile -> 5 tiles, 20 masked rows).
    vocab3, B3, T3 = 200, 300, 2
    V3 = jax.random.uniform(k_v3, (vocab3, projection_size),
                            dtype=jnp.float32, minval=-1.0, maxval=1.0)
    U3 = jax.random.uniform(k_u3, (vocab3, projection_size),
                            dtype=jnp.float32, minval=-0.5, maxval=0.5)
    cw3 = jax.random.randint(k_c3, (B3, 1), 0, vocab3)
    tw3 = jax.random.randint(k_t3, (B3, T3), 0, vocab3)
    ow3 = jax.random.randint(k_o3, (B3, W), 0, vocab3)
    loss3 = jax.block_until_ready(
        skipgram_forward(V3, U3, cw3, tw3, ow3, tile_b=64))
    ref3 = skipgram_reference(V3, U3, cw3, tw3, ow3)
    assert jnp.allclose(loss3, ref3, rtol=1e-5, atol=1e-5), (loss3, ref3)

    # Auto tile picker path (>= 2 tiles for v7x megacore when batch allows).
    loss4 = jax.block_until_ready(skipgram_forward(V3, U3, cw3, tw3, ow3))
    assert jnp.allclose(loss4, ref3, rtol=1e-5, atol=1e-5), (loss4, ref3)

    print("KERNEL_OK")
</pallas_src>

<mosaic_0001>
module attributes {stable_mosaic.version = 11 : i64} {
  func.func @_skipgram_loss_kernel(%arg0: i32, %arg1: memref<8x1xi32, #tpu.memory_space<vmem>>, %arg2: memref<8x1xi32, #tpu.memory_space<vmem>>, %arg3: memref<8x16xi32, #tpu.memory_space<vmem>>, %arg4: memref<32x128xf32, #tpu.memory_space<vmem>>, %arg5: memref<32x128xf32, #tpu.memory_space<vmem>>, %arg6: memref<1x8x128xf32, #tpu.memory_space<vmem>>) attributes {dimension_semantics = [#tpu.dimension_semantics<parallel>], iteration_bounds = array<i64: 1>, scalar_prefetch = 0 : i64, scratch_operands = 0 : i64, tpu.core_type = #tpu.core_type<tc>, window_params = [{transform_indices = @transform_0, window_bounds = array<i64: 8, 1>}, {transform_indices = @transform_1, window_bounds = array<i64: 8, 1>}, {transform_indices = @transform_2, window_bounds = array<i64: 8, 16>}, {pipeline_mode = #tpu.pipeline_mode<synchronous>, transform_indices = @transform_3, window_bounds = array<i64: 32, 128>}, {pipeline_mode = #tpu.pipeline_mode<synchronous>, transform_indices = @transform_4, window_bounds = array<i64: 32, 128>}, {transform_indices = @transform_5, window_bounds = array<i64: 1, 8, 128>}]} {
    %c0 = arith.constant 0 : index
    %c0_0 = arith.constant 0 : index
    %0 = vector.load %arg1[%c0, %c0_0] : memref<8x1xi32, #tpu.memory_space<vmem>>, vector<8x1xi32>
    %c0_1 = arith.constant 0 : index
    %c0_2 = arith.constant 0 : index
    %1 = vector.load %arg2[%c0_1, %c0_2] : memref<8x1xi32, #tpu.memory_space<vmem>>, vector<8x1xi32>
    %c0_3 = arith.constant 0 : index
    %c0_4 = arith.constant 0 : index
    %2 = vector.load %arg3[%c0_3, %c0_4] : memref<8x16xi32, #tpu.memory_space<vmem>>, vector<8x16xi32>
    %3 = tpu.iota {dimensions = array<i32: 1>} : vector<8x128xi32>
    %4 = vector.broadcast %0 : vector<8x1xi32> to vector<8x128xi32>
    %5 = arith.cmpi eq, %3, %4 : vector<8x128xi32>
    %6 = arith.extui %5 : vector<8x128xi1> to vector<8x128xi32>
    %7 = arith.sitofp %6 : vector<8x128xi32> to vector<8x128xf32>
    %cst = arith.constant 0.000000e+00 : f32
    %8 = vector.broadcast %cst : f32 to vector<8x128xf32>
    %c0_5 = arith.constant 0 : index
    %c0_6 = arith.constant 0 : index
    %9 = vector.load %arg4[%c0_5, %c0_6] : memref<32x128xf32, #tpu.memory_space<vmem>>, vector<1x128xf32>
    %c0_7 = arith.constant 0 : index
    %c0_8 = arith.constant 0 : index
    %10 = vector.load %arg5[%c0_7, %c0_8] : memref<32x128xf32, #tpu.memory_space<vmem>>, vector<1x128xf32>
    %11 = vector.broadcast %9 : vector<1x128xf32> to vector<8x128xf32>
    %12 = arith.mulf %7, %11 : vector<8x128xf32>
    %cst_9 = arith.constant dense<0.000000e+00> : vector<8xf32>
    %13 = vector.multi_reduction <add>, %12, %cst_9 [1] : vector<8x128xf32> to vector<8xf32>
    %14 = vector.shape_cast %13 : vector<8xf32> to vector<8x1xf32>
    %15 = vector.broadcast %14 : vector<8x1xf32> to vector<8x128xf32>
    %16 = vector.broadcast %10 : vector<1x128xf32> to vector<8x128xf32>
    %17 = arith.mulf %15, %16 : vector<8x128xf32>
    %18 = arith.addf %8, %17 : vector<8x128xf32>
    %c1 = arith.constant 1 : index
    %c0_10 = arith.constant 0 : index
    %19 = vector.load %arg4[%c1, %c0_10] : memref<32x128xf32, #tpu.memory_space<vmem>>, vector<1x128xf32>
    %c1_11 = arith.constant 1 : index
    %c0_12 = arith.constant 0 : index
    %20 = vector.load %arg5[%c1_11, %c0_12] : memref<32x128xf32, #tpu.memory_space<vmem>>, vector<1x128xf32>
    %21 = vector.broadcast %19 : vector<1x128xf32> to vector<8x128xf32>
    %22 = arith.mulf %7, %21 : vector<8x128xf32>
    %cst_13 = arith.constant dense<0.000000e+00> : vector<8xf32>
    %23 = vector.multi_reduction <add>, %22, %cst_13 [1] : vector<8x128xf32> to vector<8xf32>
    %24 = vector.shape_cast %23 : vector<8xf32> to vector<8x1xf32>
    %25 = vector.broadcast %24 : vector<8x1xf32> to vector<8x128xf32>
    %26 = vector.broadcast %20 : vector<1x128xf32> to vector<8x128xf32>
    %27 = arith.mulf %25, %26 : vector<8x128xf32>
    %28 = arith.addf %18, %27 : vector<8x128xf32>
    %c2 = arith.constant 2 : index
    %c0_14 = arith.constant 0 : index
    %29 = vector.load %arg4[%c2, %c0_14] : memref<32x128xf32, #tpu.memory_space<vmem>>, vector<1x128xf32>
    %c2_15 = arith.constant 2 : index
    %c0_16 = arith.constant 0 : index
    %30 = vector.load %arg5[%c2_15, %c0_16] : memref<32x128xf32, #tpu.memory_space<vmem>>, vector<1x128xf32>
    %31 = vector.broadcast %29 : vector<1x128xf32> to vector<8x128xf32>
    %32 = arith.mulf %7, %31 : vector<8x128xf32>
    %cst_17 = arith.constant dense<0.000000e+00> : vector<8xf32>
    %33 = vector.multi_reduction <add>, %32, %cst_17 [1] : vector<8x128xf32> to vector<8xf32>
    %34 = vector.shape_cast %33 : vector<8xf32> to vector<8x1xf32>
    %35 = vector.broadcast %34 : vector<8x1xf32> to vector<8x128xf32>
    %36 = vector.broadcast %30 : vector<1x128xf32> to vector<8x128xf32>
    %37 = arith.mulf %35, %36 : vector<8x128xf32>
    %38 = arith.addf %28, %37 : vector<8x128xf32>
    %c3 = arith.constant 3 : index
    %c0_18 = arith.constant 0 : index
    %39 = vector.load %arg4[%c3, %c0_18] : memref<32x128xf32, #tpu.memory_space<vmem>>, vector<1x128xf32>
    %c3_19 = arith.constant 3 : index
    %c0_20 = arith.constant 0 : index
    %40 = vector.load %arg5[%c3_19, %c0_20] : memref<32x128xf32, #tpu.memory_space<vmem>>, vector<1x128xf32>
    %41 = vector.broadcast %39 : vector<1x128xf32> to vector<8x128xf32>
    %42 = arith.mulf %7, %41 : vector<8x128xf32>
    %cst_21 = arith.constant dense<0.000000e+00> : vector<8xf32>
    %43 = vector.multi_reduction <add>, %42, %cst_21 [1] : vector<8x128xf32> to vector<8xf32>
    %44 = vector.shape_cast %43 : vector<8xf32> to vector<8x1xf32>
    %45 = vector.broadcast %44 : vector<8x1xf32> to vector<8x128xf32>
    %46 = vector.broadcast %40 : vector<1x128xf32> to vector<8x128xf32>
    %47 = arith.mulf %45, %46 : vector<8x128xf32>
    %48 = arith.addf %38, %47 : vector<8x128xf32>
    %c4 = arith.constant 4 : index
    %c0_22 = arith.constant 0 : index
    %49 = vector.load %arg4[%c4, %c0_22] : memref<32x128xf32, #tpu.memory_space<vmem>>, vector<1x128xf32>
    %c4_23 = arith.constant 4 : index
    %c0_24 = arith.constant 0 : index
    %50 = vector.load %arg5[%c4_23, %c0_24] : memref<32x128xf32, #tpu.memory_space<vmem>>, vector<1x128xf32>
    %51 = vector.broadcast %49 : vector<1x128xf32> to vector<8x128xf32>
    %52 = arith.mulf %7, %51 : vector<8x128xf32>
    %cst_25 = arith.constant dense<0.000000e+00> : vector<8xf32>
    %53 = vector.multi_reduction <add>, %52, %cst_25 [1] : vector<8x128xf32> to vector<8xf32>
    %54 = vector.shape_cast %53 : vector<8xf32> to vector<8x1xf32>
    %55 = vector.broadcast %54 : vector<8x1xf32> to vector<8x128xf32>
    %56 = vector.broadcast %50 : vector<1x128xf32> to vector<8x128xf32>
    %57 = arith.mulf %55, %56 : vector<8x128xf32>
    %58 = arith.addf %48, %57 : vector<8x128xf32>
    %c5 = arith.constant 5 : index
    %c0_26 = arith.constant 0 : index
    %59 = vector.load %arg4[%c5, %c0_26] : memref<32x128xf32, #tpu.memory_space<vmem>>, vector<1x128xf32>
    %c5_27 = arith.constant 5 : index
    %c0_28 = arith.constant 0 : index
    %60 = vector.load %arg5[%c5_27, %c0_28] : memref<32x128xf32, #tpu.memory_space<vmem>>, vector<1x128xf32>
    %61 = vector.broadcast %59 : vector<1x128xf32> to vector<8x128xf32>
    %62 = arith.mulf %7, %61 : vector<8x128xf32>
    %cst_29 = arith.constant dense<0.000000e+00> : vector<8xf32>
    %63 = vector.multi_reduction <add>, %62, %cst_29 [1] : vector<8x128xf32> to vector<8xf32>
    %64 = vector.shape_cast %63 : vector<8xf32> to vector<8x1xf32>
    %65 = vector.broadcast %64 : vector<8x1xf32> to vector<8x128xf32>
    %66 = vector.broadcast %60 : vector<1x128xf32> to vector<8x128xf32>
    %67 = arith.mulf %65, %66 : vector<8x128xf32>
    %68 = arith.addf %58, %67 : vector<8x128xf32>
    %c6 = arith.constant 6 : index
    %c0_30 = arith.constant 0 : index
    %69 = vector.load %arg4[%c6, %c0_30] : memref<32x128xf32, #tpu.memory_space<vmem>>, vector<1x128xf32>
    %c6_31 = arith.constant 6 : index
    %c0_32 = arith.constant 0 : index
    %70 = vector.load %arg5[%c6_31, %c0_32] : memref<32x128xf32, #tpu.memory_space<vmem>>, vector<1x128xf32>
    %71 = vector.broadcast %69 : vector<1x128xf32> to vector<8x128xf32>
    %72 = arith.mulf %7, %71 : vector<8x128xf32>
    %cst_33 = arith.constant dense<0.000000e+00> : vector<8xf32>
    %73 = vector.multi_reduction <add>, %72, %cst_33 [1] : vector<8x128xf32> to vector<8xf32>
    %74 = vector.shape_cast %73 : vector<8xf32> to vector<8x1xf32>
    %75 = vector.broadcast %74 : vector<8x1xf32> to vector<8x128xf32>
    %76 = vector.broadcast %70 : vector<1x128xf32> to vector<8x128xf32>
    %77 = arith.mulf %75, %76 : vector<8x128xf32>
    %78 = arith.addf %68, %77 : vector<8x128xf32>
    %c7 = arith.constant 7 : index
    %c0_34 = arith.constant 0 : index
    %79 = vector.load %arg4[%c7, %c0_34] : memref<32x128xf32, #tpu.memory_space<vmem>>, vector<1x128xf32>
    %c7_35 = arith.constant 7 : index
    %c0_36 = arith.constant 0 : index
    %80 = vector.load %arg5[%c7_35, %c0_36] : memref<32x128xf32, #tpu.memory_space<vmem>>, vector<1x128xf32>
    %81 = vector.broadcast %79 : vector<1x128xf32> to vector<8x128xf32>
    %82 = arith.mulf %7, %81 : vector<8x128xf32>
    %cst_37 = arith.constant dense<0.000000e+00> : vector<8xf32>
    %83 = vector.multi_reduction <add>, %82, %cst_37 [1] : vector<8x128xf32> to vector<8xf32>
    %84 = vector.shape_cast %83 : vector<8xf32> to vector<8x1xf32>
    %85 = vector.broadcast %84 : vector<8x1xf32> to vector<8x128xf32>
    %86 = vector.broadcast %80 : vector<1x128xf32> to vector<8x128xf32>
    %87 = arith.mulf %85, %86 : vector<8x128xf32>
    %88 = arith.addf %78, %87 : vector<8x128xf32>
    %c8 = arith.constant 8 : index
    %c0_38 = arith.constant 0 : index
    %89 = vector.load %arg4[%c8, %c0_38] : memref<32x128xf32, #tpu.memory_space<vmem>>, vector<1x128xf32>
    %c8_39 = arith.constant 8 : index
    %c0_40 = arith.constant 0 : index
    %90 = vector.load %arg5[%c8_39, %c0_40] : memref<32x128xf32, #tpu.memory_space<vmem>>, vector<1x128xf32>
    %91 = vector.broadcast %89 : vector<1x128xf32> to vector<8x128xf32>
    %92 = arith.mulf %7, %91 : vector<8x128xf32>
    %cst_41 = arith.constant dense<0.000000e+00> : vector<8xf32>
    %93 = vector.multi_reduction <add>, %92, %cst_41 [1] : vector<8x128xf32> to vector<8xf32>
    %94 = vector.shape_cast %93 : vector<8xf32> to vector<8x1xf32>
    %95 = vector.broadcast %94 : vector<8x1xf32> to vector<8x128xf32>
    %96 = vector.broadcast %90 : vector<1x128xf32> to vector<8x128xf32>
    %97 = arith.mulf %95, %96 : vector<8x128xf32>
    %98 = arith.addf %88, %97 : vector<8x128xf32>
    %c9 = arith.constant 9 : index
    %c0_42 = arith.constant 0 : index
    %99 = vector.load %arg4[%c9, %c0_42] : memref<32x128xf32, #tpu.memory_space<vmem>>, vector<1x128xf32>
    %c9_43 = arith.constant 9 : index
    %c0_44 = arith.constant 0 : index
    %100 = vector.load %arg5[%c9_43, %c0_44] : memref<32x128xf32, #tpu.memory_space<vmem>>, vector<1x128xf32>
    %101 = vector.broadcast %99 : vector<1x128xf32> to vector<8x128xf32>
    %102 = arith.mulf %7, %101 : vector<8x128xf32>
    %cst_45 = arith.constant dense<0.000000e+00> : vector<8xf32>
    %103 = vector.multi_reduction <add>, %102, %cst_45 [1] : vector<8x128xf32> to vector<8xf32>
    %104 = vector.shape_cast %103 : vector<8xf32> to vector<8x1xf32>
    %105 = vector.broadcast %104 : vector<8x1xf32> to vector<8x128xf32>
    %106 = vector.broadcast %100 : vector<1x128xf32> to vector<8x128xf32>
    %107 = arith.mulf %105, %106 : vector<8x128xf32>
    %108 = arith.addf %98, %107 : vector<8x128xf32>
    %c10 = arith.constant 10 : index
    %c0_46 = arith.constant 0 : index
    %109 = vector.load %arg4[%c10, %c0_46] : memref<32x128xf32, #tpu.memory_space<vmem>>, vector<1x128xf32>
    %c10_47 = arith.constant 10 : index
    %c0_48 = arith.constant 0 : index
    %110 = vector.load %arg5[%c10_47, %c0_48] : memref<32x128xf32, #tpu.memory_space<vmem>>, vector<1x128xf32>
    %111 = vector.broadcast %109 : vector<1x128xf32> to vector<8x128xf32>
    %112 = arith.mulf %7, %111 : vector<8x128xf32>
    %cst_49 = arith.constant dense<0.000000e+00> : vector<8xf32>
    %113 = vector.multi_reduction <add>, %112, %cst_49 [1] : vector<8x128xf32> to vector<8xf32>
    %114 = vector.shape_cast %113 : vector<8xf32> to vector<8x1xf32>
    %115 = vector.broadcast %114 : vector<8x1xf32> to vector<8x128xf32>
    %116 = vector.broadcast %110 : vector<1x128xf32> to vector<8x128xf32>
    %117 = arith.mulf %115, %116 : vector<8x128xf32>
    %118 = arith.addf %108, %117 : vector<8x128xf32>
    %c11 = arith.constant 11 : index
    %c0_50 = arith.constant 0 : index
    %119 = vector.load %arg4[%c11, %c0_50] : memref<32x128xf32, #tpu.memory_space<vmem>>, vector<1x128xf32>
    %c11_51 = arith.constant 11 : index
    %c0_52 = arith.constant 0 : index
    %120 = vector.load %arg5[%c11_51, %c0_52] : memref<32x128xf32, #tpu.memory_space<vmem>>, vector<1x128xf32>
    %121 = vector.broadcast %119 : vector<1x128xf32> to vector<8x128xf32>
    %122 = arith.mulf %7, %121 : vector<8x128xf32>
    %cst_53 = arith.constant dense<0.000000e+00> : vector<8xf32>
    %123 = vector.multi_reduction <add>, %122, %cst_53 [1] : vector<8x128xf32> to vector<8xf32>
    %124 = vector.shape_cast %123 : vector<8xf32> to vector<8x1xf32>
    %125 = vector.broadcast %124 : vector<8x1xf32> to vector<8x128xf32>
    %126 = vector.broadcast %120 : vector<1x128xf32> to vector<8x128xf32>
    %127 = arith.mulf %125, %126 : vector<8x128xf32>
    %128 = arith.addf %118, %127 : vector<8x128xf32>
    %c12 = arith.constant 12 : index
    %c0_54 = arith.constant 0 : index
    %129 = vector.load %arg4[%c12, %c0_54] : memref<32x128xf32, #tpu.memory_space<vmem>>, vector<1x128xf32>
    %c12_55 = arith.constant 12 : index
    %c0_56 = arith.constant 0 : index
    %130 = vector.load %arg5[%c12_55, %c0_56] : memref<32x128xf32, #tpu.memory_space<vmem>>, vector<1x128xf32>
    %131 = vector.broadcast %129 : vector<1x128xf32> to vector<8x128xf32>
    %132 = arith.mulf %7, %131 : vector<8x128xf32>
    %cst_57 = arith.constant dense<0.000000e+00> : vector<8xf32>
    %133 = vector.multi_reduction <add>, %132, %cst_57 [1] : vector<8x128xf32> to vector<8xf32>
    %134 = vector.shape_cast %133 : vector<8xf32> to vector<8x1xf32>
    %135 = vector.broadcast %134 : vector<8x1xf32> to vector<8x128xf32>
    %136 = vector.broadcast %130 : vector<1x128xf32> to vector<8x128xf32>
    %137 = arith.mulf %135, %136 : vector<8x128xf32>
    %138 = arith.addf %128, %137 : vector<8x128xf32>
    %c13 = arith.constant 13 : index
    %c0_58 = arith.constant 0 : index
    %139 = vector.load %arg4[%c13, %c0_58] : memref<32x128xf32, #tpu.memory_space<vmem>>, vector<1x128xf32>
    %c13_59 = arith.constant 13 : index
    %c0_60 = arith.constant 0 : index
    %140 = vector.load %arg5[%c13_59, %c0_60] : memref<32x128xf32, #tpu.memory_space<vmem>>, vector<1x128xf32>
    %141 = vector.broadcast %139 : vector<1x128xf32> to vector<8x128xf32>
    %142 = arith.mulf %7, %141 : vector<8x128xf32>
    %cst_61 = arith.constant dense<0.000000e+00> : vector<8xf32>
    %143 = vector.multi_reduction <add>, %142, %cst_61 [1] : vector<8x128xf32> to vector<8xf32>
    %144 = vector.shape_cast %143 : vector<8xf32> to vector<8x1xf32>
    %145 = vector.broadcast %144 : vector<8x1xf32> to vector<8x128xf32>
    %146 = vector.broadcast %140 : vector<1x128xf32> to vector<8x128xf32>
    %147 = arith.mulf %145, %146 : vector<8x128xf32>
    %148 = arith.addf %138, %147 : vector<8x128xf32>
    %c14 = arith.constant 14 : index
    %c0_62 = arith.constant 0 : index
    %149 = vector.load %arg4[%c14, %c0_62] : memref<32x128xf32, #tpu.memory_space<vmem>>, vector<1x128xf32>
    %c14_63 = arith.constant 14 : index
    %c0_64 = arith.constant 0 : index
    %150 = vector.load %arg5[%c14_63, %c0_64] : memref<32x128xf32, #tpu.memory_space<vmem>>, vector<1x128xf32>
    %151 = vector.broadcast %149 : vector<1x128xf32> to vector<8x128xf32>
    %152 = arith.mulf %7, %151 : vector<8x128xf32>
    %cst_65 = arith.constant dense<0.000000e+00> : vector<8xf32>
    %153 = vector.multi_reduction <add>, %152, %cst_65 [1] : vector<8x128xf32> to vector<8xf32>
    %154 = vector.shape_cast %153 : vector<8xf32> to vector<8x1xf32>
    %155 = vector.broadcast %154 : vector<8x1xf32> to vector<8x128xf32>
    %156 = vector.broadcast %150 : vector<1x128xf32> to vector<8x128xf32>
    %157 = arith.mulf %155, %156 : vector<8x128xf32>
    %158 = arith.addf %148, %157 : vector<8x128xf32>
    %c15 = arith.constant 15 : index
    %c0_66 = arith.constant 0 : index
    %159 = vector.load %arg4[%c15, %c0_66] : memref<32x128xf32, #tpu.memory_space<vmem>>, vector<1x128xf32>
    %c15_67 = arith.constant 15 : index
    %c0_68 = arith.constant 0 : index
    %160 = vector.load %arg5[%c15_67, %c0_68] : memref<32x128xf32, #tpu.memory_space<vmem>>, vector<1x128xf32>
    %161 = vector.broadcast %159 : vector<1x128xf32> to vector<8x128xf32>
    %162 = arith.mulf %7, %161 : vector<8x128xf32>
    %cst_69 = arith.constant dense<0.000000e+00> : vector<8xf32>
    %163 = vector.multi_reduction <add>, %162, %cst_69 [1] : vector<8x128xf32> to vector<8xf32>
    %164 = vector.shape_cast %163 : vector<8xf32> to vector<8x1xf32>
    %165 = vector.broadcast %164 : vector<8x1xf32> to vector<8x128xf32>
    %166 = vector.broadcast %160 : vector<1x128xf32> to vector<8x128xf32>
    %167 = arith.mulf %165, %166 : vector<8x128xf32>
    %168 = arith.addf %158, %167 : vector<8x128xf32>
    %c16 = arith.constant 16 : index
    %c0_70 = arith.constant 0 : index
    %169 = vector.load %arg4[%c16, %c0_70] : memref<32x128xf32, #tpu.memory_space<vmem>>, vector<1x128xf32>
    %c16_71 = arith.constant 16 : index
    %c0_72 = arith.constant 0 : index
    %170 = vector.load %arg5[%c16_71, %c0_72] : memref<32x128xf32, #tpu.memory_space<vmem>>, vector<1x128xf32>
    %171 = vector.broadcast %169 : vector<1x128xf32> to vector<8x128xf32>
    %172 = arith.mulf %7, %171 : vector<8x128xf32>
    %cst_73 = arith.constant dense<0.000000e+00> : vector<8xf32>
    %173 = vector.multi_reduction <add>, %172, %cst_73 [1] : vector<8x128xf32> to vector<8xf32>
    %174 = vector.shape_cast %173 : vector<8xf32> to vector<8x1xf32>
    %175 = vector.broadcast %174 : vector<8x1xf32> to vector<8x128xf32>
    %176 = vector.broadcast %170 : vector<1x128xf32> to vector<8x128xf32>
    %177 = arith.mulf %175, %176 : vector<8x128xf32>
    %178 = arith.addf %168, %177 : vector<8x128xf32>
    %c17 = arith.constant 17 : index
    %c0_74 = arith.constant 0 : index
    %179 = vector.load %arg4[%c17, %c0_74] : memref<32x128xf32, #tpu.memory_space<vmem>>, vector<1x128xf32>
    %c17_75 = arith.constant 17 : index
    %c0_76 = arith.constant 0 : index
    %180 = vector.load %arg5[%c17_75, %c0_76] : memref<32x128xf32, #tpu.memory_space<vmem>>, vector<1x128xf32>
    %181 = vector.broadcast %179 : vector<1x128xf32> to vector<8x128xf32>
    %182 = arith.mulf %7, %181 : vector<8x128xf32>
    %cst_77 = arith.constant dense<0.000000e+00> : vector<8xf32>
    %183 = vector.multi_reduction <add>, %182, %cst_77 [1] : vector<8x128xf32> to vector<8xf32>
    %184 = vector.shape_cast %183 : vector<8xf32> to vector<8x1xf32>
    %185 = vector.broadcast %184 : vector<8x1xf32> to vector<8x128xf32>
    %186 = vector.broadcast %180 : vector<1x128xf32> to vector<8x128xf32>
    %187 = arith.mulf %185, %186 : vector<8x128xf32>
    %188 = arith.addf %178, %187 : vector<8x128xf32>
    %c18 = arith.constant 18 : index
    %c0_78 = arith.constant 0 : index
    %189 = vector.load %arg4[%c18, %c0_78] : memref<32x128xf32, #tpu.memory_space<vmem>>, vector<1x128xf32>
    %c18_79 = arith.constant 18 : index
    %c0_80 = arith.constant 0 : index
    %190 = vector.load %arg5[%c18_79, %c0_80] : memref<32x128xf32, #tpu.memory_space<vmem>>, vector<1x128xf32>
    %191 = vector.broadcast %189 : vector<1x128xf32> to vector<8x128xf32>
    %192 = arith.mulf %7, %191 : vector<8x128xf32>
    %cst_81 = arith.constant dense<0.000000e+00> : vector<8xf32>
    %193 = vector.multi_reduction <add>, %192, %cst_81 [1] : vector<8x128xf32> to vector<8xf32>
    %194 = vector.shape_cast %193 : vector<8xf32> to vector<8x1xf32>
    %195 = vector.broadcast %194 : vector<8x1xf32> to vector<8x128xf32>
    %196 = vector.broadcast %190 : vector<1x128xf32> to vector<8x128xf32>
    %197 = arith.mulf %195, %196 : vector<8x128xf32>
    %198 = arith.addf %188, %197 : vector<8x128xf32>
    %c19 = arith.constant 19 : index
    %c0_82 = arith.constant 0 : index
    %199 = vector.load %arg4[%c19, %c0_82] : memref<32x128xf32, #tpu.memory_space<vmem>>, vector<1x128xf32>
    %c19_83 = arith.constant 19 : index
    %c0_84 = arith.constant 0 : index
    %200 = vector.load %arg5[%c19_83, %c0_84] : memref<32x128xf32, #tpu.memory_space<vmem>>, vector<1x128xf32>
    %201 = vector.broadcast %199 : vector<1x128xf32> to vector<8x128xf32>
    %202 = arith.mulf %7, %201 : vector<8x128xf32>
    %cst_85 = arith.constant dense<0.000000e+00> : vector<8xf32>
    %203 = vector.multi_reduction <add>, %202, %cst_85 [1] : vector<8x128xf32> to vector<8xf32>
    %204 = vector.shape_cast %203 : vector<8xf32> to vector<8x1xf32>
    %205 = vector.broadcast %204 : vector<8x1xf32> to vector<8x128xf32>
    %206 = vector.broadcast %200 : vector<1x128xf32> to vector<8x128xf32>
    %207 = arith.mulf %205, %206 : vector<8x128xf32>
    %208 = arith.addf %198, %207 : vector<8x128xf32>
    %c20 = arith.constant 20 : index
    %c0_86 = arith.constant 0 : index
    %209 = vector.load %arg4[%c20, %c0_86] : memref<32x128xf32, #tpu.memory_space<vmem>>, vector<1x128xf32>
    %c20_87 = arith.constant 20 : index
    %c0_88 = arith.constant 0 : index
    %210 = vector.load %arg5[%c20_87, %c0_88] : memref<32x128xf32, #tpu.memory_space<vmem>>, vector<1x128xf32>
    %211 = vector.broadcast %209 : vector<1x128xf32> to vector<8x128xf32>
    %212 = arith.mulf %7, %211 : vector<8x128xf32>
    %cst_89 = arith.constant dense<0.000000e+00> : vector<8xf32>
    %213 = vector.multi_reduction <add>, %212, %cst_89 [1] : vector<8x128xf32> to vector<8xf32>
    %214 = vector.shape_cast %213 : vector<8xf32> to vector<8x1xf32>
    %215 = vector.broadcast %214 : vector<8x1xf32> to vector<8x128xf32>
    %216 = vector.broadcast %210 : vector<1x128xf32> to vector<8x128xf32>
    %217 = arith.mulf %215, %216 : vector<8x128xf32>
    %218 = arith.addf %208, %217 : vector<8x128xf32>
    %c21 = arith.constant 21 : index
    %c0_90 = arith.constant 0 : index
    %219 = vector.load %arg4[%c21, %c0_90] : memref<32x128xf32, #tpu.memory_space<vmem>>, vector<1x128xf32>
    %c21_91 = arith.constant 21 : index
    %c0_92 = arith.constant 0 : index
    %220 = vector.load %arg5[%c21_91, %c0_92] : memref<32x128xf32, #tpu.memory_space<vmem>>, vector<1x128xf32>
    %221 = vector.broadcast %219 : vector<1x128xf32> to vector<8x128xf32>
    %222 = arith.mulf %7, %221 : vector<8x128xf32>
    %cst_93 = arith.constant dense<0.000000e+00> : vector<8xf32>
    %223 = vector.multi_reduction <add>, %222, %cst_93 [1] : vector<8x128xf32> to vector<8xf32>
    %224 = vector.shape_cast %223 : vector<8xf32> to vector<8x1xf32>
    %225 = vector.broadcast %224 : vector<8x1xf32> to vector<8x128xf32>
    %226 = vector.broadcast %220 : vector<1x128xf32> to vector<8x128xf32>
    %227 = arith.mulf %225, %226 : vector<8x128xf32>
    %228 = arith.addf %218, %227 : vector<8x128xf32>
    %c22 = arith.constant 22 : index
    %c0_94 = arith.constant 0 : index
    %229 = vector.load %arg4[%c22, %c0_94] : memref<32x128xf32, #tpu.memory_space<vmem>>, vector<1x128xf32>
    %c22_95 = arith.constant 22 : index
    %c0_96 = arith.constant 0 : index
    %230 = vector.load %arg5[%c22_95, %c0_96] : memref<32x128xf32, #tpu.memory_space<vmem>>, vector<1x128xf32>
    %231 = vector.broadcast %229 : vector<1x128xf32> to vector<8x128xf32>
    %232 = arith.mulf %7, %231 : vector<8x128xf32>
    %cst_97 = arith.constant dense<0.000000e+00> : vector<8xf32>
    %233 = vector.multi_reduction <add>, %232, %cst_97 [1] : vector<8x128xf32> to vector<8xf32>
    %234 = vector.shape_cast %233 : vector<8xf32> to vector<8x1xf32>
    %235 = vector.broadcast %234 : vector<8x1xf32> to vector<8x128xf32>
    %236 = vector.broadcast %230 : vector<1x128xf32> to vector<8x128xf32>
    %237 = arith.mulf %235, %236 : vector<8x128xf32>
    %238 = arith.addf %228, %237 : vector<8x128xf32>
    %c23 = arith.constant 23 : index
    %c0_98 = arith.constant 0 : index
    %239 = vector.load %arg4[%c23, %c0_98] : memref<32x128xf32, #tpu.memory_space<vmem>>, vector<1x128xf32>
    %c23_99 = arith.constant 23 : index
    %c0_100 = arith.constant 0 : index
    %240 = vector.load %arg5[%c23_99, %c0_100] : memref<32x128xf32, #tpu.memory_space<vmem>>, vector<1x128xf32>
    %241 = vector.broadcast %239 : vector<1x128xf32> to vector<8x128xf32>
    %242 = arith.mulf %7, %241 : vector<8x128xf32>
    %cst_101 = arith.constant dense<0.000000e+00> : vector<8xf32>
    %243 = vector.multi_reduction <add>, %242, %cst_101 [1] : vector<8x128xf32> to vector<8xf32>
    %244 = vector.shape_cast %243 : vector<8xf32> to vector<8x1xf32>
    %245 = vector.broadcast %244 : vector<8x1xf32> to vector<8x128xf32>
    %246 = vector.broadcast %240 : vector<1x128xf32> to vector<8x128xf32>
    %247 = arith.mulf %245, %246 : vector<8x128xf32>
    %248 = arith.addf %238, %247 : vector<8x128xf32>
    %c24 = arith.constant 24 : index
    %c0_102 = arith.constant 0 : index
    %249 = vector.load %arg4[%c24, %c0_102] : memref<32x128xf32, #tpu.memory_space<vmem>>, vector<1x128xf32>
    %c24_103 = arith.constant 24 : index
    %c0_104 = arith.constant 0 : index
    %250 = vector.load %arg5[%c24_103, %c0_104] : memref<32x128xf32, #tpu.memory_space<vmem>>, vector<1x128xf32>
    %251 = vector.broadcast %249 : vector<1x128xf32> to vector<8x128xf32>
    %252 = arith.mulf %7, %251 : vector<8x128xf32>
    %cst_105 = arith.constant dense<0.000000e+00> : vector<8xf32>
    %253 = vector.multi_reduction <add>, %252, %cst_105 [1] : vector<8x128xf32> to vector<8xf32>
    %254 = vector.shape_cast %253 : vector<8xf32> to vector<8x1xf32>
    %255 = vector.broadcast %254 : vector<8x1xf32> to vector<8x128xf32>
    %256 = vector.broadcast %250 : vector<1x128xf32> to vector<8x128xf32>
    %257 = arith.mulf %255, %256 : vector<8x128xf32>
    %258 = arith.addf %248, %257 : vector<8x128xf32>
    %c25 = arith.constant 25 : index
    %c0_106 = arith.constant 0 : index
    %259 = vector.load %arg4[%c25, %c0_106] : memref<32x128xf32, #tpu.memory_space<vmem>>, vector<1x128xf32>
    %c25_107 = arith.constant 25 : index
    %c0_108 = arith.constant 0 : index
    %260 = vector.load %arg5[%c25_107, %c0_108] : memref<32x128xf32, #tpu.memory_space<vmem>>, vector<1x128xf32>
    %261 = vector.broadcast %259 : vector<1x128xf32> to vector<8x128xf32>
    %262 = arith.mulf %7, %261 : vector<8x128xf32>
    %cst_109 = arith.constant dense<0.000000e+00> : vector<8xf32>
    %263 = vector.multi_reduction <add>, %262, %cst_109 [1] : vector<8x128xf32> to vector<8xf32>
    %264 = vector.shape_cast %263 : vector<8xf32> to vector<8x1xf32>
    %265 = vector.broadcast %264 : vector<8x1xf32> to vector<8x128xf32>
    %266 = vector.broadcast %260 : vector<1x128xf32> to vector<8x128xf32>
    %267 = arith.mulf %265, %266 : vector<8x128xf32>
    %268 = arith.addf %258, %267 : vector<8x128xf32>
    %c26 = arith.constant 26 : index
    %c0_110 = arith.constant 0 : index
    %269 = vector.load %arg4[%c26, %c0_110] : memref<32x128xf32, #tpu.memory_space<vmem>>, vector<1x128xf32>
    %c26_111 = arith.constant 26 : index
    %c0_112 = arith.constant 0 : index
    %270 = vector.load %arg5[%c26_111, %c0_112] : memref<32x128xf32, #tpu.memory_space<vmem>>, vector<1x128xf32>
    %271 = vector.broadcast %269 : vector<1x128xf32> to vector<8x128xf32>
    %272 = arith.mulf %7, %271 : vector<8x128xf32>
    %cst_113 = arith.constant dense<0.000000e+00> : vector<8xf32>
    %273 = vector.multi_reduction <add>, %272, %cst_113 [1] : vector<8x128xf32> to vector<8xf32>
    %274 = vector.shape_cast %273 : vector<8xf32> to vector<8x1xf32>
    %275 = vector.broadcast %274 : vector<8x1xf32> to vector<8x128xf32>
    %276 = vector.broadcast %270 : vector<1x128xf32> to vector<8x128xf32>
    %277 = arith.mulf %275, %276 : vector<8x128xf32>
    %278 = arith.addf %268, %277 : vector<8x128xf32>
    %c27 = arith.constant 27 : index
    %c0_114 = arith.constant 0 : index
    %279 = vector.load %arg4[%c27, %c0_114] : memref<32x128xf32, #tpu.memory_space<vmem>>, vector<1x128xf32>
    %c27_115 = arith.constant 27 : index
    %c0_116 = arith.constant 0 : index
    %280 = vector.load %arg5[%c27_115, %c0_116] : memref<32x128xf32, #tpu.memory_space<vmem>>, vector<1x128xf32>
    %281 = vector.broadcast %279 : vector<1x128xf32> to vector<8x128xf32>
    %282 = arith.mulf %7, %281 : vector<8x128xf32>
    %cst_117 = arith.constant dense<0.000000e+00> : vector<8xf32>
    %283 = vector.multi_reduction <add>, %282, %cst_117 [1] : vector<8x128xf32> to vector<8xf32>
    %284 = vector.shape_cast %283 : vector<8xf32> to vector<8x1xf32>
    %285 = vector.broadcast %284 : vector<8x1xf32> to vector<8x128xf32>
    %286 = vector.broadcast %280 : vector<1x128xf32> to vector<8x128xf32>
    %287 = arith.mulf %285, %286 : vector<8x128xf32>
    %288 = arith.addf %278, %287 : vector<8x128xf32>
    %c28 = arith.constant 28 : index
    %c0_118 = arith.constant 0 : index
    %289 = vector.load %arg4[%c28, %c0_118] : memref<32x128xf32, #tpu.memory_space<vmem>>, vector<1x128xf32>
    %c28_119 = arith.constant 28 : index
    %c0_120 = arith.constant 0 : index
    %290 = vector.load %arg5[%c28_119, %c0_120] : memref<32x128xf32, #tpu.memory_space<vmem>>, vector<1x128xf32>
    %291 = vector.broadcast %289 : vector<1x128xf32> to vector<8x128xf32>
    %292 = arith.mulf %7, %291 : vector<8x128xf32>
    %cst_121 = arith.constant dense<0.000000e+00> : vector<8xf32>
    %293 = vector.multi_reduction <add>, %292, %cst_121 [1] : vector<8x128xf32> to vector<8xf32>
    %294 = vector.shape_cast %293 : vector<8xf32> to vector<8x1xf32>
    %295 = vector.broadcast %294 : vector<8x1xf32> to vector<8x128xf32>
    %296 = vector.broadcast %290 : vector<1x128xf32> to vector<8x128xf32>
    %297 = arith.mulf %295, %296 : vector<8x128xf32>
    %298 = arith.addf %288, %297 : vector<8x128xf32>
    %c29 = arith.constant 29 : index
    %c0_122 = arith.constant 0 : index
    %299 = vector.load %arg4[%c29, %c0_122] : memref<32x128xf32, #tpu.memory_space<vmem>>, vector<1x128xf32>
    %c29_123 = arith.constant 29 : index
    %c0_124 = arith.constant 0 : index
    %300 = vector.load %arg5[%c29_123, %c0_124] : memref<32x128xf32, #tpu.memory_space<vmem>>, vector<1x128xf32>
    %301 = vector.broadcast %299 : vector<1x128xf32> to vector<8x128xf32>
    %302 = arith.mulf %7, %301 : vector<8x128xf32>
    %cst_125 = arith.constant dense<0.000000e+00> : vector<8xf32>
    %303 = vector.multi_reduction <add>, %302, %cst_125 [1] : vector<8x128xf32> to vector<8xf32>
    %304 = vector.shape_cast %303 : vector<8xf32> to vector<8x1xf32>
    %305 = vector.broadcast %304 : vector<8x1xf32> to vector<8x128xf32>
    %306 = vector.broadcast %300 : vector<1x128xf32> to vector<8x128xf32>
    %307 = arith.mulf %305, %306 : vector<8x128xf32>
    %308 = arith.addf %298, %307 : vector<8x128xf32>
    %c30 = arith.constant 30 : index
    %c0_126 = arith.constant 0 : index
    %309 = vector.load %arg4[%c30, %c0_126] : memref<32x128xf32, #tpu.memory_space<vmem>>, vector<1x128xf32>
    %c30_127 = arith.constant 30 : index
    %c0_128 = arith.constant 0 : index
    %310 = vector.load %arg5[%c30_127, %c0_128] : memref<32x128xf32, #tpu.memory_space<vmem>>, vector<1x128xf32>
    %311 = vector.broadcast %309 : vector<1x128xf32> to vector<8x128xf32>
    %312 = arith.mulf %7, %311 : vector<8x128xf32>
    %cst_129 = arith.constant dense<0.000000e+00> : vector<8xf32>
    %313 = vector.multi_reduction <add>, %312, %cst_129 [1] : vector<8x128xf32> to vector<8xf32>
    %314 = vector.shape_cast %313 : vector<8xf32> to vector<8x1xf32>
    %315 = vector.broadcast %314 : vector<8x1xf32> to vector<8x128xf32>
    %316 = vector.broadcast %310 : vector<1x128xf32> to vector<8x128xf32>
    %317 = arith.mulf %315, %316 : vector<8x128xf32>
    %318 = arith.addf %308, %317 : vector<8x128xf32>
    %c31 = arith.constant 31 : index
    %c0_130 = arith.constant 0 : index
    %319 = vector.load %arg4[%c31, %c0_130] : memref<32x128xf32, #tpu.memory_space<vmem>>, vector<1x128xf32>
    %c31_131 = arith.constant 31 : index
    %c0_132 = arith.constant 0 : index
    %320 = vector.load %arg5[%c31_131, %c0_132] : memref<32x128xf32, #tpu.memory_space<vmem>>, vector<1x128xf32>
    %321 = vector.broadcast %319 : vector<1x128xf32> to vector<8x128xf32>
    %322 = arith.mulf %7, %321 : vector<8x128xf32>
    %cst_133 = arith.constant dense<0.000000e+00> : vector<8xf32>
    %323 = vector.multi_reduction <add>, %322, %cst_133 [1] : vector<8x128xf32> to vector<8xf32>
    %324 = vector.shape_cast %323 : vector<8xf32> to vector<8x1xf32>
    %325 = vector.broadcast %324 : vector<8x1xf32> to vector<8x128xf32>
    %326 = vector.broadcast %320 : vector<1x128xf32> to vector<8x128xf32>
    %327 = arith.mulf %325, %326 : vector<8x128xf32>
    %328 = arith.addf %318, %327 : vector<8x128xf32>
    %329 = vector.extract_strided_slice %2 {offsets = [0, 0], sizes = [8, 1], strides = [1, 1]} : vector<8x16xi32> to vector<8x1xi32>
    %330 = vector.broadcast %329 : vector<8x1xi32> to vector<8x128xi32>
    %331 = arith.cmpi eq, %3, %330 : vector<8x128xi32>
    %cst_134 = arith.constant 0.000000e+00 : f32
    %332 = vector.broadcast %cst_134 : f32 to vector<8x128xf32>
    %333 = arith.select %331, %328, %332 : vector<8x128xi1>, vector<8x128xf32>
    %cst_135 = arith.constant dense<0.000000e+00> : vector<8xf32>
    %334 = vector.multi_reduction <add>, %333, %cst_135 [1] : vector<8x128xf32> to vector<8xf32>
    %335 = vector.shape_cast %334 : vector<8xf32> to vector<8x1xf32>
    %336 = vector.extract_strided_slice %2 {offsets = [0, 1], sizes = [8, 1], strides = [1, 1]} : vector<8x16xi32> to vector<8x1xi32>
    %337 = vector.broadcast %336 : vector<8x1xi32> to vector<8x128xi32>
    %338 = arith.cmpi eq, %3, %337 : vector<8x128xi32>
    %cst_136 = arith.constant 0.000000e+00 : f32
    %339 = vector.broadcast %cst_136 : f32 to vector<8x128xf32>
    %340 = arith.select %338, %328, %339 : vector<8x128xi1>, vector<8x128xf32>
    %cst_137 = arith.constant dense<0.000000e+00> : vector<8xf32>
    %341 = vector.multi_reduction <add>, %340, %cst_137 [1] : vector<8x128xf32> to vector<8xf32>
    %342 = vector.shape_cast %341 : vector<8xf32> to vector<8x1xf32>
    %343 = vector.extract_strided_slice %2 {offsets = [0, 2], sizes = [8, 1], strides = [1, 1]} : vector<8x16xi32> to vector<8x1xi32>
    %344 = vector.broadcast %343 : vector<8x1xi32> to vector<8x128xi32>
    %345 = arith.cmpi eq, %3, %344 : vector<8x128xi32>
    %cst_138 = arith.constant 0.000000e+00 : f32
    %346 = vector.broadcast %cst_138 : f32 to vector<8x128xf32>
    %347 = arith.select %345, %328, %346 : vector<8x128xi1>, vector<8x128xf32>
    %cst_139 = arith.constant dense<0.000000e+00> : vector<8xf32>
    %348 = vector.multi_reduction <add>, %347, %cst_139 [1] : vector<8x128xf32> to vector<8xf32>
    %349 = vector.shape_cast %348 : vector<8xf32> to vector<8x1xf32>
    %350 = vector.extract_strided_slice %2 {offsets = [0, 3], sizes = [8, 1], strides = [1, 1]} : vector<8x16xi32> to vector<8x1xi32>
    %351 = vector.broadcast %350 : vector<8x1xi32> to vector<8x128xi32>
    %352 = arith.cmpi eq, %3, %351 : vector<8x128xi32>
    %cst_140 = arith.constant 0.000000e+00 : f32
    %353 = vector.broadcast %cst_140 : f32 to vector<8x128xf32>
    %354 = arith.select %352, %328, %353 : vector<8x128xi1>, vector<8x128xf32>
    %cst_141 = arith.constant dense<0.000000e+00> : vector<8xf32>
    %355 = vector.multi_reduction <add>, %354, %cst_141 [1] : vector<8x128xf32> to vector<8xf32>
    %356 = vector.shape_cast %355 : vector<8xf32> to vector<8x1xf32>
    %357 = vector.extract_strided_slice %2 {offsets = [0, 4], sizes = [8, 1], strides = [1, 1]} : vector<8x16xi32> to vector<8x1xi32>
    %358 = vector.broadcast %357 : vector<8x1xi32> to vector<8x128xi32>
    %359 = arith.cmpi eq, %3, %358 : vector<8x128xi32>
    %cst_142 = arith.constant 0.000000e+00 : f32
    %360 = vector.broadcast %cst_142 : f32 to vector<8x128xf32>
    %361 = arith.select %359, %328, %360 : vector<8x128xi1>, vector<8x128xf32>
    %cst_143 = arith.constant dense<0.000000e+00> : vector<8xf32>
    %362 = vector.multi_reduction <add>, %361, %cst_143 [1] : vector<8x128xf32> to vector<8xf32>
    %363 = vector.shape_cast %362 : vector<8xf32> to vector<8x1xf32>
    %364 = vector.extract_strided_slice %2 {offsets = [0, 5], sizes = [8, 1], strides = [1, 1]} : vector<8x16xi32> to vector<8x1xi32>
    %365 = vector.broadcast %364 : vector<8x1xi32> to vector<8x128xi32>
    %366 = arith.cmpi eq, %3, %365 : vector<8x128xi32>
    %cst_144 = arith.constant 0.000000e+00 : f32
    %367 = vector.broadcast %cst_144 : f32 to vector<8x128xf32>
    %368 = arith.select %366, %328, %367 : vector<8x128xi1>, vector<8x128xf32>
    %cst_145 = arith.constant dense<0.000000e+00> : vector<8xf32>
    %369 = vector.multi_reduction <add>, %368, %cst_145 [1] : vector<8x128xf32> to vector<8xf32>
    %370 = vector.shape_cast %369 : vector<8xf32> to vector<8x1xf32>
    %371 = vector.extract_strided_slice %2 {offsets = [0, 6], sizes = [8, 1], strides = [1, 1]} : vector<8x16xi32> to vector<8x1xi32>
    %372 = vector.broadcast %371 : vector<8x1xi32> to vector<8x128xi32>
    %373 = arith.cmpi eq, %3, %372 : vector<8x128xi32>
    %cst_146 = arith.constant 0.000000e+00 : f32
    %374 = vector.broadcast %cst_146 : f32 to vector<8x128xf32>
    %375 = arith.select %373, %328, %374 : vector<8x128xi1>, vector<8x128xf32>
    %cst_147 = arith.constant dense<0.000000e+00> : vector<8xf32>
    %376 = vector.multi_reduction <add>, %375, %cst_147 [1] : vector<8x128xf32> to vector<8xf32>
    %377 = vector.shape_cast %376 : vector<8xf32> to vector<8x1xf32>
    %378 = vector.extract_strided_slice %2 {offsets = [0, 7], sizes = [8, 1], strides = [1, 1]} : vector<8x16xi32> to vector<8x1xi32>
    %379 = vector.broadcast %378 : vector<8x1xi32> to vector<8x128xi32>
    %380 = arith.cmpi eq, %3, %379 : vector<8x128xi32>
    %cst_148 = arith.constant 0.000000e+00 : f32
    %381 = vector.broadcast %cst_148 : f32 to vector<8x128xf32>
    %382 = arith.select %380, %328, %381 : vector<8x128xi1>, vector<8x128xf32>
    %cst_149 = arith.constant dense<0.000000e+00> : vector<8xf32>
    %383 = vector.multi_reduction <add>, %382, %cst_149 [1] : vector<8x128xf32> to vector<8xf32>
    %384 = vector.shape_cast %383 : vector<8xf32> to vector<8x1xf32>
    %385 = vector.extract_strided_slice %2 {offsets = [0, 8], sizes = [8, 1], strides = [1, 1]} : vector<8x16xi32> to vector<8x1xi32>
    %386 = vector.broadcast %385 : vector<8x1xi32> to vector<8x128xi32>
    %387 = arith.cmpi eq, %3, %386 : vector<8x128xi32>
    %cst_150 = arith.constant 0.000000e+00 : f32
    %388 = vector.broadcast %cst_150 : f32 to vector<8x128xf32>
    %389 = arith.select %387, %328, %388 : vector<8x128xi1>, vector<8x128xf32>
    %cst_151 = arith.constant dense<0.000000e+00> : vector<8xf32>
    %390 = vector.multi_reduction <add>, %389, %cst_151 [1] : vector<8x128xf32> to vector<8xf32>
    %391 = vector.shape_cast %390 : vector<8xf32> to vector<8x1xf32>
    %392 = vector.extract_strided_slice %2 {offsets = [0, 9], sizes = [8, 1], strides = [1, 1]} : vector<8x16xi32> to vector<8x1xi32>
    %393 = vector.broadcast %392 : vector<8x1xi32> to vector<8x128xi32>
    %394 = arith.cmpi eq, %3, %393 : vector<8x128xi32>
    %cst_152 = arith.constant 0.000000e+00 : f32
    %395 = vector.broadcast %cst_152 : f32 to vector<8x128xf32>
    %396 = arith.select %394, %328, %395 : vector<8x128xi1>, vector<8x128xf32>
    %cst_153 = arith.constant dense<0.000000e+00> : vector<8xf32>
    %397 = vector.multi_reduction <add>, %396, %cst_153 [1] : vector<8x128xf32> to vector<8xf32>
    %398 = vector.shape_cast %397 : vector<8xf32> to vector<8x1xf32>
    %399 = vector.extract_strided_slice %2 {offsets = [0, 10], sizes = [8, 1], strides = [1, 1]} : vector<8x16xi32> to vector<8x1xi32>
    %400 = vector.broadcast %399 : vector<8x1xi32> to vector<8x128xi32>
    %401 = arith.cmpi eq, %3, %400 : vector<8x128xi32>
    %cst_154 = arith.constant 0.000000e+00 : f32
    %402 = vector.broadcast %cst_154 : f32 to vector<8x128xf32>
    %403 = arith.select %401, %328, %402 : vector<8x128xi1>, vector<8x128xf32>
    %cst_155 = arith.constant dense<0.000000e+00> : vector<8xf32>
    %404 = vector.multi_reduction <add>, %403, %cst_155 [1] : vector<8x128xf32> to vector<8xf32>
    %405 = vector.shape_cast %404 : vector<8xf32> to vector<8x1xf32>
    %406 = vector.extract_strided_slice %2 {offsets = [0, 11], sizes = [8, 1], strides = [1, 1]} : vector<8x16xi32> to vector<8x1xi32>
    %407 = vector.broadcast %406 : vector<8x1xi32> to vector<8x128xi32>
    %408 = arith.cmpi eq, %3, %407 : vector<8x128xi32>
    %cst_156 = arith.constant 0.000000e+00 : f32
    %409 = vector.broadcast %cst_156 : f32 to vector<8x128xf32>
    %410 = arith.select %408, %328, %409 : vector<8x128xi1>, vector<8x128xf32>
    %cst_157 = arith.constant dense<0.000000e+00> : vector<8xf32>
    %411 = vector.multi_reduction <add>, %410, %cst_157 [1] : vector<8x128xf32> to vector<8xf32>
    %412 = vector.shape_cast %411 : vector<8xf32> to vector<8x1xf32>
    %413 = vector.extract_strided_slice %2 {offsets = [0, 12], sizes = [8, 1], strides = [1, 1]} : vector<8x16xi32> to vector<8x1xi32>
    %414 = vector.broadcast %413 : vector<8x1xi32> to vector<8x128xi32>
    %415 = arith.cmpi eq, %3, %414 : vector<8x128xi32>
    %cst_158 = arith.constant 0.000000e+00 : f32
    %416 = vector.broadcast %cst_158 : f32 to vector<8x128xf32>
    %417 = arith.select %415, %328, %416 : vector<8x128xi1>, vector<8x128xf32>
    %cst_159 = arith.constant dense<0.000000e+00> : vector<8xf32>
    %418 = vector.multi_reduction <add>, %417, %cst_159 [1] : vector<8x128xf32> to vector<8xf32>
    %419 = vector.shape_cast %418 : vector<8xf32> to vector<8x1xf32>
    %420 = vector.extract_strided_slice %2 {offsets = [0, 13], sizes = [8, 1], strides = [1, 1]} : vector<8x16xi32> to vector<8x1xi32>
    %421 = vector.broadcast %420 : vector<8x1xi32> to vector<8x128xi32>
    %422 = arith.cmpi eq, %3, %421 : vector<8x128xi32>
    %cst_160 = arith.constant 0.000000e+00 : f32
    %423 = vector.broadcast %cst_160 : f32 to vector<8x128xf32>
    %424 = arith.select %422, %328, %423 : vector<8x128xi1>, vector<8x128xf32>
    %cst_161 = arith.constant dense<0.000000e+00> : vector<8xf32>
    %425 = vector.multi_reduction <add>, %424, %cst_161 [1] : vector<8x128xf32> to vector<8xf32>
    %426 = vector.shape_cast %425 : vector<8xf32> to vector<8x1xf32>
    %427 = vector.extract_strided_slice %2 {offsets = [0, 14], sizes = [8, 1], strides = [1, 1]} : vector<8x16xi32> to vector<8x1xi32>
    %428 = vector.broadcast %427 : vector<8x1xi32> to vector<8x128xi32>
    %429 = arith.cmpi eq, %3, %428 : vector<8x128xi32>
    %cst_162 = arith.constant 0.000000e+00 : f32
    %430 = vector.broadcast %cst_162 : f32 to vector<8x128xf32>
    %431 = arith.select %429, %328, %430 : vector<8x128xi1>, vector<8x128xf32>
    %cst_163 = arith.constant dense<0.000000e+00> : vector<8xf32>
    %432 = vector.multi_reduction <add>, %431, %cst_163 [1] : vector<8x128xf32> to vector<8xf32>
    %433 = vector.shape_cast %432 : vector<8xf32> to vector<8x1xf32>
    %434 = vector.extract_strided_slice %2 {offsets = [0, 15], sizes = [8, 1], strides = [1, 1]} : vector<8x16xi32> to vector<8x1xi32>
    %435 = vector.broadcast %434 : vector<8x1xi32> to vector<8x128xi32>
    %436 = arith.cmpi eq, %3, %435 : vector<8x128xi32>
    %cst_164 = arith.constant 0.000000e+00 : f32
    %437 = vector.broadcast %cst_164 : f32 to vector<8x128xf32>
    %438 = arith.select %436, %328, %437 : vector<8x128xi1>, vector<8x128xf32>
    %cst_165 = arith.constant dense<0.000000e+00> : vector<8xf32>
    %439 = vector.multi_reduction <add>, %438, %cst_165 [1] : vector<8x128xf32> to vector<8xf32>
    %440 = vector.shape_cast %439 : vector<8xf32> to vector<8x1xf32>
    %441 = arith.maximumf %335, %342 : vector<8x1xf32>
    %442 = arith.maximumf %441, %349 : vector<8x1xf32>
    %443 = arith.maximumf %442, %356 : vector<8x1xf32>
    %444 = arith.maximumf %443, %363 : vector<8x1xf32>
    %445 = arith.maximumf %444, %370 : vector<8x1xf32>
    %446 = arith.maximumf %445, %377 : vector<8x1xf32>
    %447 = arith.maximumf %446, %384 : vector<8x1xf32>
    %448 = arith.maximumf %447, %391 : vector<8x1xf32>
    %449 = arith.maximumf %448, %398 : vector<8x1xf32>
    %450 = arith.maximumf %449, %405 : vector<8x1xf32>
    %451 = arith.maximumf %450, %412 : vector<8x1xf32>
    %452 = arith.maximumf %451, %419 : vector<8x1xf32>
    %453 = arith.maximumf %452, %426 : vector<8x1xf32>
    %454 = arith.maximumf %453, %433 : vector<8x1xf32>
    %455 = arith.maximumf %454, %440 : vector<8x1xf32>
    %cst_166 = arith.constant 0.000000e+00 : f32
    %456 = vector.broadcast %cst_166 : f32 to vector<8x1xf32>
    %457 = arith.subf %335, %455 : vector<8x1xf32>
    %458 = math.exp %457 : vector<8x1xf32>
    %459 = arith.addf %456, %458 : vector<8x1xf32>
    %460 = arith.subf %342, %455 : vector<8x1xf32>
    %461 = math.exp %460 : vector<8x1xf32>
    %462 = arith.addf %459, %461 : vector<8x1xf32>
    %463 = arith.subf %349, %455 : vector<8x1xf32>
    %464 = math.exp %463 : vector<8x1xf32>
    %465 = arith.addf %462, %464 : vector<8x1xf32>
    %466 = arith.subf %356, %455 : vector<8x1xf32>
    %467 = math.exp %466 : vector<8x1xf32>
    %468 = arith.addf %465, %467 : vector<8x1xf32>
    %469 = arith.subf %363, %455 : vector<8x1xf32>
    %470 = math.exp %469 : vector<8x1xf32>
    %471 = arith.addf %468, %470 : vector<8x1xf32>
    %472 = arith.subf %370, %455 : vector<8x1xf32>
    %473 = math.exp %472 : vector<8x1xf32>
    %474 = arith.addf %471, %473 : vector<8x1xf32>
    %475 = arith.subf %377, %455 : vector<8x1xf32>
    %476 = math.exp %475 : vector<8x1xf32>
    %477 = arith.addf %474, %476 : vector<8x1xf32>
    %478 = arith.subf %384, %455 : vector<8x1xf32>
    %479 = math.exp %478 : vector<8x1xf32>
    %480 = arith.addf %477, %479 : vector<8x1xf32>
    %481 = arith.subf %391, %455 : vector<8x1xf32>
    %482 = math.exp %481 : vector<8x1xf32>
    %483 = arith.addf %480, %482 : vector<8x1xf32>
    %484 = arith.subf %398, %455 : vector<8x1xf32>
    %485 = math.exp %484 : vector<8x1xf32>
    %486 = arith.addf %483, %485 : vector<8x1xf32>
    %487 = arith.subf %405, %455 : vector<8x1xf32>
    %488 = math.exp %487 : vector<8x1xf32>
    %489 = arith.addf %486, %488 : vector<8x1xf32>
    %490 = arith.subf %412, %455 : vector<8x1xf32>
    %491 = math.exp %490 : vector<8x1xf32>
    %492 = arith.addf %489, %491 : vector<8x1xf32>
    %493 = arith.subf %419, %455 : vector<8x1xf32>
    %494 = math.exp %493 : vector<8x1xf32>
    %495 = arith.addf %492, %494 : vector<8x1xf32>
    %496 = arith.subf %426, %455 : vector<8x1xf32>
    %497 = math.exp %496 : vector<8x1xf32>
    %498 = arith.addf %495, %497 : vector<8x1xf32>
    %499 = arith.subf %433, %455 : vector<8x1xf32>
    %500 = math.exp %499 : vector<8x1xf32>
    %501 = arith.addf %498, %500 : vector<8x1xf32>
    %502 = arith.subf %440, %455 : vector<8x1xf32>
    %503 = math.exp %502 : vector<8x1xf32>
    %504 = arith.addf %501, %503 : vector<8x1xf32>
    %505 = math.log %504 : vector<8x1xf32>
    %506 = arith.addf %455, %505 : vector<8x1xf32>
    %cst_167 = arith.constant 0.000000e+00 : f32
    %507 = vector.broadcast %cst_167 : f32 to vector<8x1xf32>
    %508 = vector.broadcast %1 : vector<8x1xi32> to vector<8x128xi32>
    %509 = arith.cmpi eq, %3, %508 : vector<8x128xi32>
    %cst_168 = arith.constant 0.000000e+00 : f32
    %510 = vector.broadcast %cst_168 : f32 to vector<8x128xf32>
    %511 = arith.select %509, %328, %510 : vector<8x128xi1>, vector<8x128xf32>
    %cst_169 = arith.constant dense<0.000000e+00> : vector<8xf32>
    %512 = vector.multi_reduction <add>, %511, %cst_169 [1] : vector<8x128xf32> to vector<8xf32>
    %513 = vector.shape_cast %512 : vector<8xf32> to vector<8x1xf32>
    %514 = arith.addf %507, %513 : vector<8x1xf32>
    %c8_i32 = arith.constant 8 : i32
    %515 = arith.muli %arg0, %c8_i32 : i32
    %516 = tpu.iota {dimensions = array<i32: 0>} : vector<8x1xi32>
    %517 = vector.broadcast %515 : i32 to vector<8x1xi32>
    %518 = arith.addi %517, %516 : vector<8x1xi32>
    %c8_i32_170 = arith.constant 8 : i32
    %519 = vector.broadcast %c8_i32_170 : i32 to vector<8x1xi32>
    %520 = arith.cmpi slt, %518, %519 : vector<8x1xi32>
    %cst_171 = arith.constant 0.000000e+00 : f32
    %521 = vector.broadcast %cst_171 : f32 to vector<8x1xf32>
    %522 = arith.select %520, %506, %521 : vector<8x1xi1>, vector<8x1xf32>
    %523 = vector.shape_cast %522 : vector<8x1xf32> to vector<1x8x1xf32>
    %cst_172 = arith.constant dense<0.000000e+00> : vector<1xf32>
    %524 = vector.multi_reduction <add>, %523, %cst_172 [1, 2] : vector<1x8x1xf32> to vector<1xf32>
    %525 = vector.shape_cast %524 : vector<1xf32> to vector<1x1x1xf32>
    %526 = vector.extract %525[0, 0, 0] : f32 from vector<1x1x1xf32>
    %cst_173 = arith.constant 0.000000e+00 : f32
    %527 = vector.broadcast %cst_173 : f32 to vector<8x1xf32>
    %528 = arith.select %520, %514, %527 : vector<8x1xi1>, vector<8x1xf32>
    %529 = vector.shape_cast %528 : vector<8x1xf32> to vector<1x8x1xf32>
    %cst_174 = arith.constant dense<0.000000e+00> : vector<1xf32>
    %530 = vector.multi_reduction <add>, %529, %cst_174 [1, 2] : vector<1x8x1xf32> to vector<1xf32>
    %531 = vector.shape_cast %530 : vector<1xf32> to vector<1x1x1xf32>
    %532 = vector.extract %531[0, 0, 0] : f32 from vector<1x1x1xf32>
    %533 = tpu.iota {dimensions = array<i32: 0>} : vector<8x128xi32>
    %c0_i32 = arith.constant 0 : i32
    %534 = vector.broadcast %c0_i32 : i32 to vector<8x128xi32>
    %535 = arith.cmpi eq, %533, %534 : vector<8x128xi32>
    %c1_i32 = arith.constant 1 : i32
    %536 = vector.broadcast %c1_i32 : i32 to vector<8x128xi32>
    %537 = arith.cmpi eq, %533, %536 : vector<8x128xi32>
    %cst_175 = arith.constant 0.000000e+00 : f32
    %538 = vector.broadcast %532 : f32 to vector<8x128xf32>
    %539 = vector.broadcast %cst_175 : f32 to vector<8x128xf32>
    %540 = arith.select %537, %538, %539 : vector<8x128xi1>, vector<8x128xf32>
    %541 = vector.broadcast %526 : f32 to vector<8x128xf32>
    %542 = arith.select %535, %541, %540 : vector<8x128xi1>, vector<8x128xf32>
    %c0_176 = arith.constant 0 : index
    %c0_177 = arith.constant 0 : index
    %c0_178 = arith.constant 0 : index
    %543 = vector.load %arg6[%c0_176, %c0_177, %c0_178] : memref<1x8x128xf32, #tpu.memory_space<vmem>>, vector<1x8x128xf32>
    %544 = vector.shape_cast %543 : vector<1x8x128xf32> to vector<8x128xf32>
    %545 = vector.shape_cast %542 : vector<8x128xf32> to vector<1x8x128xf32>
    tpu.vector_store %arg6[%c0_176, %c0_177, %c0_178], %545 {strides = array<i32>} : memref<1x8x128xf32, #tpu.memory_space<vmem>>, vector<1x8x128xf32>,
    return
  }
  func.func @transform_0(%arg0: i32) -> (i32, i32) {
    %c0_i32 = arith.constant 0 : i32
    %c0_i32_0 = arith.constant 0 : i32
    return %arg0, %c0_i32 : i32, i32
  }
  func.func @transform_1(%arg0: i32) -> (i32, i32) {
    %c0_i32 = arith.constant 0 : i32
    %c0_i32_0 = arith.constant 0 : i32
    return %arg0, %c0_i32 : i32, i32
  }
  func.func @transform_2(%arg0: i32) -> (i32, i32) {
    %c0_i32 = arith.constant 0 : i32
    %c0_i32_0 = arith.constant 0 : i32
    return %arg0, %c0_i32 : i32, i32
  }
  func.func @transform_3(%arg0: i32) -> (i32, i32) {
    %c0_i32 = arith.constant 0 : i32
    %c0_i32_0 = arith.constant 0 : i32
    %c0_i32_1 = arith.constant 0 : i32
    return %c0_i32, %c0_i32_0 : i32, i32
  }
  func.func @transform_4(%arg0: i32) -> (i32, i32) {
    %c0_i32 = arith.constant 0 : i32
    %c0_i32_0 = arith.constant 0 : i32
    %c0_i32_1 = arith.constant 0 : i32
    return %c0_i32, %c0_i32_0 : i32, i32
  }
  func.func @transform_5(%arg0: i32) -> (i32, i32, i32) {
    %c0_i32 = arith.constant 0 : i32
    %c0_i32_0 = arith.constant 0 : i32
    %c0_i32_1 = arith.constant 0 : i32
    return %arg0, %c0_i32, %c0_i32_0 : i32, i32, i32
  }
}

</mosaic_0001>

<llo_original>
// kernel: skipgram_forward.1
$region0: #{skipgram_forward.1}
  #allocation0 [shape = 'u32[]', space=smem, size = 0x4, offset = 0x4, fixed_abs, tag = 'smem constant byte address 0x4 - core index']
  #allocation1 [shape = 'u32[144,128]{1,0:T(1,128)}', space=vmem, size = 0x12000, scoped, tag = 'internal scratch']
  %s0 = inlined_call_operand.vmem [shape: s32[8,1], index: 0, kind: input, shape index: {}]
  %s1 = inlined_call_operand.vmem [shape: s32[8,1], index: 1, kind: input, shape index: {}]
  %s2 = inlined_call_operand.vmem [shape: s32[8,16], index: 2, kind: input, shape index: {}]
  %s3 = inlined_call_operand.vmem [shape: f32[32,128], index: 3, kind: input, shape index: {}]
  %s4 = inlined_call_operand.vmem [shape: f32[32,128], index: 4, kind: input, shape index: {}]
  %s5 = inlined_call_operand.vmem [shape: f32[1,8,128], index: 5, kind: output, shape index: {}]
  %s6 = sld [smem:[#allocation0]]
  $region30: #{skipgram_forward.1} parent=0
    _
  %s8 = ssub.s32 1, %s6
  %s9 = scalar_select 0, %s8, %s6
  // Predicated region
  $region2: #{skipgram_forward.1} parent=0 // pred_check
    _
  $region3: #{skipgram_forward.1} parent=0 // pred_check_branch
    %11 = sbr.rel (0) target = $region5
  $region4: #{skipgram_forward.1} parent=0 // pred_region
    _
  $region5: #{skipgram_forward.1} parent=0 // pred_fallthru
    _
  // Predicated region
  $region6: #{skipgram_forward.1} parent=0 // pred_check
    _
  $region7: #{skipgram_forward.1} parent=0 // pred_check_branch
    %13 = sbr.rel (0) target = $region9
  $region8: #{skipgram_forward.1} parent=0 // pred_region
    _
  $region9: #{skipgram_forward.1} parent=0 // pred_fallthru
    _
  // Predicated region
  $region10: #{skipgram_forward.1} parent=0 // pred_check
    _
  $region11: #{skipgram_forward.1} parent=0 // pred_check_branch
    %15 = sbr.rel (0) target = $region13
  $region12: #{skipgram_forward.1} parent=0 // pred_region
    _
  $region13: #{skipgram_forward.1} parent=0 // pred_fallthru
    _
  // Predicated region
  $region14: #{skipgram_forward.1} parent=0 // pred_check
    _
  $region15: #{skipgram_forward.1} parent=0 // pred_check_branch
    %17 = sbr.rel (0) target = $region17
  $region16: #{skipgram_forward.1} parent=0 // pred_region
    _
  $region17: #{skipgram_forward.1} parent=0 // pred_fallthru
    _
  // Predicated region
  $region18: #{skipgram_forward.1} parent=0 // pred_check
    _
  $region19: #{skipgram_forward.1} parent=0 // pred_check_branch
    %19 = sbr.rel (0) target = $region21
  $region20: #{skipgram_forward.1} parent=0 // pred_region
    _
  $region21: #{skipgram_forward.1} parent=0 // pred_fallthru
    _
  %v20 = vld [vmem:[%s0] sm:$0xff]
  %v21 = vld [vmem:[%s1] sm:$0xff]
  %v22 = vld [vmem:[%s2] sm:$0xff]
  %v23 = vlaneseq
  %v24 = vand.u32 %v23, 127
  %25 = vset.pattern.permute.xlu0 0
  %26 = vperm.xlu0 %25, %v20
  %v27 = vpop.permute.xlu0 %26
  %vm28 = vcmp.eq.s32.totalorder %v24, %v27
  %v29 = vsel %vm28, 1, 0
  %v30 = vcvt.s32.f32 %v29
  %v31 = vld [vmem:[%s3] sm:$0x1]
  %v32 = vld [vmem:[%s4] sm:$0x1]
  %v33 = vlaneseq
  %v34 = vshrl.u32 %v33, 7
  %v35 = vsub.s32 0, %v34
  %v36 = vrot.slane %v31, %v35
  %v37 = vmul.f32 %v30, %v36
  %38 = vadd.xlane.f32.xlu0 %v37
  %v39 = vpop.xlane.xlu0 %38
  %v40 = vlaneseq
  %v41 = vshrl.u32 %v40, 7
  %v42 = vsub.s32 0, %v41
  %v43 = vrot.slane %v32, %v42
  %v44 = vmul.f32 %v39, %v43
  %v45 = vadd.f32 %v44, 0.0
  %v46 = vld [vmem:[%s3 + $0x1] sm:$0x1]
  %v47 = vld [vmem:[%s4 + $0x1] sm:$0x1]
  %v48 = vlaneseq
  %v49 = vshrl.u32 %v48, 7
  %v50 = vsub.s32 0, %v49
  %v51 = vrot.slane %v46, %v50
  %v52 = vmul.f32 %v30, %v51
  %53 = vadd.xlane.f32.xlu0 %v52
  %v54 = vpop.xlane.xlu0 %53
  %v55 = vlaneseq
  %v56 = vshrl.u32 %v55, 7
  %v57 = vsub.s32 0, %v56
  %v58 = vrot.slane %v47, %v57
  %v59 = vmul.f32 %v54, %v58
  %v60 = vadd.f32 %v45, %v59
  %v61 = vld [vmem:[%s3 + $0x2] sm:$0x1]
  %v62 = vld [vmem:[%s4 + $0x2] sm:$0x1]
  %v63 = vlaneseq
  %v64 = vshrl.u32 %v63, 7
  %v65 = vsub.s32 0, %v64
  %v66 = vrot.slane %v61, %v65
  %v67 = vmul.f32 %v30, %v66
  %68 = vadd.xlane.f32.xlu0 %v67
  %v69 = vpop.xlane.xlu0 %68
  %v70 = vlaneseq
  %v71 = vshrl.u32 %v70, 7
  %v72 = vsub.s32 0, %v71
  %v73 = vrot.slane %v62, %v72
  %v74 = vmul.f32 %v69, %v73
  %v75 = vadd.f32 %v60, %v74
  %v76 = vld [vmem:[%s3 + $0x3] sm:$0x1]
  %v77 = vld [vmem:[%s4 + $0x3] sm:$0x1]
  %v78 = vlaneseq
  %v79 = vshrl.u32 %v78, 7
  %v80 = vsub.s32 0, %v79
  %v81 = vrot.slane %v76, %v80
  %v82 = vmul.f32 %v30, %v81
  %83 = vadd.xlane.f32.xlu0 %v82
  %v84 = vpop.xlane.xlu0 %83
  %v85 = vlaneseq
  %v86 = vshrl.u32 %v85, 7
  %v87 = vsub.s32 0, %v86
  %v88 = vrot.slane %v77, %v87
  %v89 = vmul.f32 %v84, %v88
  %v90 = vadd.f32 %v75, %v89
  %v91 = vld [vmem:[%s3 + $0x4] sm:$0x1]
  %v92 = vld [vmem:[%s4 + $0x4] sm:$0x1]
  %v93 = vlaneseq
  %v94 = vshrl.u32 %v93, 7
  %v95 = vsub.s32 0, %v94
  %v96 = vrot.slane %v91, %v95
  %v97 = vmul.f32 %v30, %v96
  %98 = vadd.xlane.f32.xlu0 %v97
  %v99 = vpop.xlane.xlu0 %98
  %v100 = vlaneseq
  %v101 = vshrl.u32 %v100, 7
  %v102 = vsub.s32 0, %v101
  %v103 = vrot.slane %v92, %v102
  %v104 = vmul.f32 %v99, %v103
  %v105 = vadd.f32 %v90, %v104
  %v106 = vld [vmem:[%s3 + $0x5] sm:$0x1]
  %v107 = vld [vmem:[%s4 + $0x5] sm:$0x1]
  %v108 = vlaneseq
  %v109 = vshrl.u32 %v108, 7
  %v110 = vsub.s32 0, %v109
  %v111 = vrot.slane %v106, %v110
  %v112 = vmul.f32 %v30, %v111
  %113 = vadd.xlane.f32.xlu0 %v112
  %v114 = vpop.xlane.xlu0 %113
  %v115 = vlaneseq
  %v116 = vshrl.u32 %v115, 7
  %v117 = vsub.s32 0, %v116
  %v118 = vrot.slane %v107, %v117
  %v119 = vmul.f32 %v114, %v118
  %v120 = vadd.f32 %v105, %v119
  %v121 = vld [vmem:[%s3 + $0x6] sm:$0x1]
  %v122 = vld [vmem:[%s4 + $0x6] sm:$0x1]
  %v123 = vlaneseq
  %v124 = vshrl.u32 %v123, 7
  %v125 = vsub.s32 0, %v124
  %v126 = vrot.slane %v121, %v125
  %v127 = vmul.f32 %v30, %v126
  %128 = vadd.xlane.f32.xlu0 %v127
  %v129 = vpop.xlane.xlu0 %128
  %v130 = vlaneseq
  %v131 = vshrl.u32 %v130, 7
  %v132 = vsub.s32 0, %v131
  %v133 = vrot.slane %v122, %v132
  %v134 = vmul.f32 %v129, %v133
  %v135 = vadd.f32 %v120, %v134
  %v136 = vld [vmem:[%s3 + $0x7] sm:$0x1]
  %v137 = vld [vmem:[%s4 + $0x7] sm:$0x1]
  %v138 = vlaneseq
  %v139 = vshrl.u32 %v138, 7
  %v140 = vsub.s32 0, %v139
  %v141 = vrot.slane %v136, %v140
  %v142 = vmul.f32 %v30, %v141
  %143 = vadd.xlane.f32.xlu0 %v142
  %v144 = vpop.xlane.xlu0 %143
  %v145 = vlaneseq
  %v146 = vshrl.u32 %v145, 7
  %v147 = vsub.s32 0, %v146
  %v148 = vrot.slane %v137, %v147
  %v149 = vmul.f32 %v144, %v148
  %v150 = vadd.f32 %v135, %v149
  %v151 = vld [vmem:[%s3 + $0x8] sm:$0x1]
  %v152 = vld [vmem:[%s4 + $0x8] sm:$0x1]
  %v153 = vlaneseq
  %v154 = vshrl.u32 %v153, 7
  %v155 = vsub.s32 0, %v154
  %v156 = vrot.slane %v151, %v155
  %v157 = vmul.f32 %v30, %v156
  %158 = vadd.xlane.f32.xlu0 %v157
  %v159 = vpop.xlane.xlu0 %158
  %v160 = vlaneseq
  %v161 = vshrl.u32 %v160, 7
  %v162 = vsub.s32 0, %v161
  %v163 = vrot.slane %v152, %v162
  %v164 = vmul.f32 %v159, %v163
  %v165 = vadd.f32 %v150, %v164
  %v166 = vld [vmem:[%s3 + $0x9] sm:$0x1]
  %v167 = vld [vmem:[%s4 + $0x9] sm:$0x1]
  %v168 = vlaneseq
  %v169 = vshrl.u32 %v168, 7
  %v170 = vsub.s32 0, %v169
  %v171 = vrot.slane %v166, %v170
  %v172 = vmul.f32 %v30, %v171
  %173 = vadd.xlane.f32.xlu0 %v172
  %v174 = vpop.xlane.xlu0 %173
  %v175 = vlaneseq
  %v176 = vshrl.u32 %v175, 7
  %v177 = vsub.s32 0, %v176
  %v178 = vrot.slane %v167, %v177
  %v179 = vmul.f32 %v174, %v178
  %v180 = vadd.f32 %v165, %v179
  %v181 = vld [vmem:[%s3 + $0xa] sm:$0x1]
  %v182 = vld [vmem:[%s4 + $0xa] sm:$0x1]
  %v183 = vlaneseq
  %v184 = vshrl.u32 %v183, 7
  %v185 = vsub.s32 0, %v184
  %v186 = vrot.slane %v181, %v185
  %v187 = vmul.f32 %v30, %v186
  %188 = vadd.xlane.f32.xlu0 %v187
  %v189 = vpop.xlane.xlu0 %188
  %v190 = vlaneseq
  %v191 = vshrl.u32 %v190, 7
  %v192 = vsub.s32 0, %v191
  %v193 = vrot.slane %v182, %v192
  %v194 = vmul.f32 %v189, %v193
  %v195 = vadd.f32 %v180, %v194
  %v196 = vld [vmem:[%s3 + $0xb] sm:$0x1]
  %v197 = vld [vmem:[%s4 + $0xb] sm:$0x1]
  %v198 = vlaneseq
  %v199 = vshrl.u32 %v198, 7
  %v200 = vsub.s32 0, %v199
  %v201 = vrot.slane %v196, %v200
  %v202 = vmul.f32 %v30, %v201
  %203 = vadd.xlane.f32.xlu0 %v202
  %v204 = vpop.xlane.xlu0 %203
  %v205 = vlaneseq
  %v206 = vshrl.u32 %v205, 7
  %v207 = vsub.s32 0, %v206
  %v208 = vrot.slane %v197, %v207
  %v209 = vmul.f32 %v204, %v208
  %v210 = vadd.f32 %v195, %v209
  %v211 = vld [vmem:[%s3 + $0xc] sm:$0x1]
  %v212 = vld [vmem:[%s4 + $0xc] sm:$0x1]
  %v213 = vlaneseq
  %v214 = vshrl.u32 %v213, 7
  %v215 = vsub.s32 0, %v214
  %v216 = vrot.slane %v211, %v215
  %v217 = vmul.f32 %v30, %v216
  %218 = vadd.xlane.f32.xlu0 %v217
  %v219 = vpop.xlane.xlu0 %218
  %v220 = vlaneseq
  %v221 = vshrl.u32 %v220, 7
  %v222 = vsub.s32 0, %v221
  %v223 = vrot.slane %v212, %v222
  %v224 = vmul.f32 %v219, %v223
  %v225 = vadd.f32 %v210, %v224
  %v226 = vld [vmem:[%s3 + $0xd] sm:$0x1]
  %v227 = vld [vmem:[%s4 + $0xd] sm:$0x1]
  %v228 = vlaneseq
  %v229 = vshrl.u32 %v228, 7
  %v230 = vsub.s32 0, %v229
  %v231 = vrot.slane %v226, %v230
  %v232 = vmul.f32 %v30, %v231
  %233 = vadd.xlane.f32.xlu0 %v232
  %v234 = vpop.xlane.xlu0 %233
  %v235 = vlaneseq
  %v236 = vshrl.u32 %v235, 7
  %v237 = vsub.s32 0, %v236
  %v238 = vrot.slane %v227, %v237
  %v239 = vmul.f32 %v234, %v238
  %v240 = vadd.f32 %v225, %v239
  %v241 = vld [vmem:[%s3 + $0xe] sm:$0x1]
  %v242 = vld [vmem:[%s4 + $0xe] sm:$0x1]
  %v243 = vlaneseq
  %v244 = vshrl.u32 %v243, 7
  %v245 = vsub.s32 0, %v244
  %v246 = vrot.slane %v241, %v245
  %v247 = vmul.f32 %v30, %v246
  %248 = vadd.xlane.f32.xlu0 %v247
  %v249 = vpop.xlane.xlu0 %248
  %v250 = vlaneseq
  %v251 = vshrl.u32 %v250, 7
  %v252 = vsub.s32 0, %v251
  %v253 = vrot.slane %v242, %v252
  %v254 = vmul.f32 %v249, %v253
  %v255 = vadd.f32 %v240, %v254
  %v256 = vld [vmem:[%s3 + $0xf] sm:$0x1]
  %v257 = vld [vmem:[%s4 + $0xf] sm:$0x1]
  %v258 = vlaneseq
  %v259 = vshrl.u32 %v258, 7
  %v260 = vsub.s32 0, %v259
  %v261 = vrot.slane %v256, %v260
  %v262 = vmul.f32 %v30, %v261
  %263 = vadd.xlane.f32.xlu0 %v262
  %v264 = vpop.xlane.xlu0 %263
  %v265 = vlaneseq
  %v266 = vshrl.u32 %v265, 7
  %v267 = vsub.s32 0, %v266
  %v268 = vrot.slane %v257, %v267
  %v269 = vmul.f32 %v264, %v268
  %v270 = vadd.f32 %v255, %v269
  %v271 = vld [vmem:[%s3 + $0x10] sm:$0x1]
  %v272 = vld [vmem:[%s4 + $0x10] sm:$0x1]
  %v273 = vlaneseq
  %v274 = vshrl.u32 %v273, 7
  %v275 = vsub.s32 0, %v274
  %v276 = vrot.slane %v271, %v275
  %v277 = vmul.f32 %v30, %v276
  %278 = vadd.xlane.f32.xlu0 %v277
  %v279 = vpop.xlane.xlu0 %278
  %v280 = vlaneseq
  %v281 = vshrl.u32 %v280, 7
  %v282 = vsub.s32 0, %v281
  %v283 = vrot.slane %v272, %v282
  %v284 = vmul.f32 %v279, %v283
  %v285 = vadd.f32 %v270, %v284
  %v286 = vld [vmem:[%s3 + $0x11] sm:$0x1]
  %v287 = vld [vmem:[%s4 + $0x11] sm:$0x1]
  %v288 = vlaneseq
  %v289 = vshrl.u32 %v288, 7
  %v290 = vsub.s32 0, %v289
  %v291 = vrot.slane %v286, %v290
  %v292 = vmul.f32 %v30, %v291
  %293 = vadd.xlane.f32.xlu0 %v292
  %v294 = vpop.xlane.xlu0 %293
  %v295 = vlaneseq
  %v296 = vshrl.u32 %v295, 7
  %v297 = vsub.s32 0, %v296
  %v298 = vrot.slane %v287, %v297
  %v299 = vmul.f32 %v294, %v298
  %v300 = vadd.f32 %v285, %v299
  %v301 = vld [vmem:[%s3 + $0x12] sm:$0x1]
  %v302 = vld [vmem:[%s4 + $0x12] sm:$0x1]
  %v303 = vlaneseq
  %v304 = vshrl.u32 %v303, 7
  %v305 = vsub.s32 0, %v304
  %v306 = vrot.slane %v301, %v305
  %v307 = vmul.f32 %v30, %v306
  %308 = vadd.xlane.f32.xlu0 %v307
  %v309 = vpop.xlane.xlu0 %308
  %v310 = vlaneseq
  %v311 = vshrl.u32 %v310, 7
  %v312 = vsub.s32 0, %v311
  %v313 = vrot.slane %v302, %v312
  %v314 = vmul.f32 %v309, %v313
  %v315 = vadd.f32 %v300, %v314
  %v316 = vld [vmem:[%s3 + $0x13] sm:$0x1]
  %v317 = vld [vmem:[%s4 + $0x13] sm:$0x1]
  %v318 = vlaneseq
  %v319 = vshrl.u32 %v318, 7
  %v320 = vsub.s32 0, %v319
  %v321 = vrot.slane %v316, %v320
  %v322 = vmul.f32 %v30, %v321
  %323 = vadd.xlane.f32.xlu0 %v322
  %v324 = vpop.xlane.xlu0 %323
  %v325 = vlaneseq
  %v326 = vshrl.u32 %v325, 7
  %v327 = vsub.s32 0, %v326
  %v328 = vrot.slane %v317, %v327
  %v329 = vmul.f32 %v324, %v328
  %v330 = vadd.f32 %v315, %v329
  %v331 = vld [vmem:[%s3 + $0x14] sm:$0x1]
  %v332 = vld [vmem:[%s4 + $0x14] sm:$0x1]
  %v333 = vlaneseq
  %v334 = vshrl.u32 %v333, 7
  %v335 = vsub.s32 0, %v334
  %v336 = vrot.slane %v331, %v335
  %v337 = vmul.f32 %v30, %v336
  %338 = vadd.xlane.f32.xlu0 %v337
  %v339 = vpop.xlane.xlu0 %338
  %v340 = vlaneseq
  %v341 = vshrl.u32 %v340, 7
  %v342 = vsub.s32 0, %v341
  %v343 = vrot.slane %v332, %v342
  %v344 = vmul.f32 %v339, %v343
  %v345 = vadd.f32 %v330, %v344
  %v346 = vld [vmem:[%s3 + $0x15] sm:$0x1]
  %v347 = vld [vmem:[%s4 + $0x15] sm:$0x1]
  %v348 = vlaneseq
  %v349 = vshrl.u32 %v348, 7
  %v350 = vsub.s32 0, %v349
  %v351 = vrot.slane %v346, %v350
  %v352 = vmul.f32 %v30, %v351
  %353 = vadd.xlane.f32.xlu0 %v352
  %v354 = vpop.xlane.xlu0 %353
  %v355 = vlaneseq
  %v356 = vshrl.u32 %v355, 7
  %v357 = vsub.s32 0, %v356
  %v358 = vrot.slane %v347, %v357
  %v359 = vmul.f32 %v354, %v358
  %v360 = vadd.f32 %v345, %v359
  %v361 = vld [vmem:[%s3 + $0x16] sm:$0x1]
  %v362 = vld [vmem:[%s4 + $0x16] sm:$0x1]
  %v363 = vlaneseq
  %v364 = vshrl.u32 %v363, 7
  %v365 = vsub.s32 0, %v364
  %v366 = vrot.slane %v361, %v365
  %v367 = vmul.f32 %v30, %v366
  %368 = vadd.xlane.f32.xlu0 %v367
  %v369 = vpop.xlane.xlu0 %368
  %v370 = vlaneseq
  %v371 = vshrl.u32 %v370, 7
  %v372 = vsub.s32 0, %v371
  %v373 = vrot.slane %v362, %v372
  %v374 = vmul.f32 %v369, %v373
  %v375 = vadd.f32 %v360, %v374
  %v376 = vld [vmem:[%s3 + $0x17] sm:$0x1]
  %v377 = vld [vmem:[%s4 + $0x17] sm:$0x1]
  %v378 = vlaneseq
  %v379 = vshrl.u32 %v378, 7
  %v380 = vsub.s32 0, %v379
  %v381 = vrot.slane %v376, %v380
  %v382 = vmul.f32 %v30, %v381
  %383 = vadd.xlane.f32.xlu0 %v382
  %v384 = vpop.xlane.xlu0 %383
  %v385 = vlaneseq
  %v386 = vshrl.u32 %v385, 7
  %v387 = vsub.s32 0, %v386
  %v388 = vrot.slane %v377, %v387
  %v389 = vmul.f32 %v384, %v388
  %v390 = vadd.f32 %v375, %v389
  %v391 = vld [vmem:[%s3 + $0x18] sm:$0x1]
  %v392 = vld [vmem:[%s4 + $0x18] sm:$0x1]
  %v393 = vlaneseq
  %v394 = vshrl.u32 %v393, 7
  %v395 = vsub.s32 0, %v394
  %v396 = vrot.slane %v391, %v395
  %v397 = vmul.f32 %v30, %v396
  %398 = vadd.xlane.f32.xlu0 %v397
  %v399 = vpop.xlane.xlu0 %398
  %v400 = vlaneseq
  %v401 = vshrl.u32 %v400, 7
  %v402 = vsub.s32 0, %v401
  %v403 = vrot.slane %v392, %v402
  %v404 = vmul.f32 %v399, %v403
  %v405 = vadd.f32 %v390, %v404
  %v406 = vld [vmem:[%s3 + $0x19] sm:$0x1]
  %v407 = vld [vmem:[%s4 + $0x19] sm:$0x1]
  %v408 = vlaneseq
  %v409 = vshrl.u32 %v408, 7
  %v410 = vsub.s32 0, %v409
  %v411 = vrot.slane %v406, %v410
  %v412 = vmul.f32 %v30, %v411
  %413 = vadd.xlane.f32.xlu0 %v412
  %v414 = vpop.xlane.xlu0 %413
  %v415 = vlaneseq
  %v416 = vshrl.u32 %v415, 7
  %v417 = vsub.s32 0, %v416
  %v418 = vrot.slane %v407, %v417
  %v419 = vmul.f32 %v414, %v418
  %v420 = vadd.f32 %v405, %v419
  %v421 = vld [vmem:[%s3 + $0x1a] sm:$0x1]
  %v422 = vld [vmem:[%s4 + $0x1a] sm:$0x1]
  %v423 = vlaneseq
  %v424 = vshrl.u32 %v423, 7
  %v425 = vsub.s32 0, %v424
  %v426 = vrot.slane %v421, %v425
  %v427 = vmul.f32 %v30, %v426
  %428 = vadd.xlane.f32.xlu0 %v427
  %v429 = vpop.xlane.xlu0 %428
  %v430 = vlaneseq
  %v431 = vshrl.u32 %v430, 7
  %v432 = vsub.s32 0, %v431
  %v433 = vrot.slane %v422, %v432
  %v434 = vmul.f32 %v429, %v433
  %v435 = vadd.f32 %v420, %v434
  %v436 = vld [vmem:[%s3 + $0x1b] sm:$0x1]
  %v437 = vld [vmem:[%s4 + $0x1b] sm:$0x1]
  %v438 = vlaneseq
  %v439 = vshrl.u32 %v438, 7
  %v440 = vsub.s32 0, %v439
  %v441 = vrot.slane %v436, %v440
  %v442 = vmul.f32 %v30, %v441
  %443 = vadd.xlane.f32.xlu0 %v442
  %v444 = vpop.xlane.xlu0 %443
  %v445 = vlaneseq
  %v446 = vshrl.u32 %v445, 7
  %v447 = vsub.s32 0, %v446
  %v448 = vrot.slane %v437, %v447
  %v449 = vmul.f32 %v444, %v448
  %v450 = vadd.f32 %v435, %v449
  %v451 = vld [vmem:[%s3 + $0x1c] sm:$0x1]
  %v452 = vld [vmem:[%s4 + $0x1c] sm:$0x1]
  %v453 = vlaneseq
  %v454 = vshrl.u32 %v453, 7
  %v455 = vsub.s32 0, %v454
  %v456 = vrot.slane %v451, %v455
  %v457 = vmul.f32 %v30, %v456
  %458 = vadd.xlane.f32.xlu0 %v457
  %v459 = vpop.xlane.xlu0 %458
  %v460 = vlaneseq
  %v461 = vshrl.u32 %v460, 7
  %v462 = vsub.s32 0, %v461
  %v463 = vrot.slane %v452, %v462
  %v464 = vmul.f32 %v459, %v463
  %v465 = vadd.f32 %v450, %v464
  %v466 = vld [vmem:[%s3 + $0x1d] sm:$0x1]
  %v467 = vld [vmem:[%s4 + $0x1d] sm:$0x1]
  %v468 = vlaneseq
  %v469 = vshrl.u32 %v468, 7
  %v470 = vsub.s32 0, %v469
  %v471 = vrot.slane %v466, %v470
  %v472 = vmul.f32 %v30, %v471
  %473 = vadd.xlane.f32.xlu0 %v472
  %v474 = vpop.xlane.xlu0 %473
  %v475 = vlaneseq
  %v476 = vshrl.u32 %v475, 7
  %v477 = vsub.s32 0, %v476
  %v478 = vrot.slane %v467, %v477
  %v479 = vmul.f32 %v474, %v478
  %v480 = vadd.f32 %v465, %v479
  %v481 = vld [vmem:[%s3 + $0x1e] sm:$0x1]
  %v482 = vld [vmem:[%s4 + $0x1e] sm:$0x1]
  %v483 = vlaneseq
  %v484 = vshrl.u32 %v483, 7
  %v485 = vsub.s32 0, %v484
  %v486 = vrot.slane %v481, %v485
  %v487 = vmul.f32 %v30, %v486
  %488 = vadd.xlane.f32.xlu0 %v487
  %v489 = vpop.xlane.xlu0 %488
  %v490 = vlaneseq
  %v491 = vshrl.u32 %v490, 7
  %v492 = vsub.s32 0, %v491
  %v493 = vrot.slane %v482, %v492
  %v494 = vmul.f32 %v489, %v493
  %v495 = vadd.f32 %v480, %v494
  %v496 = vld [vmem:[%s3 + $0x1f] sm:$0x1]
  %v497 = vld [vmem:[%s4 + $0x1f] sm:$0x1]
  %v498 = vlaneseq
  %v499 = vshrl.u32 %v498, 7
  %v500 = vsub.s32 0, %v499
  %v501 = vrot.slane %v496, %v500
  %v502 = vmul.f32 %v30, %v501
  %503 = vadd.xlane.f32.xlu0 %v502
  %v504 = vpop.xlane.xlu0 %503
  %v505 = vlaneseq
  %v506 = vshrl.u32 %v505, 7
  %v507 = vsub.s32 0, %v506
  %v508 = vrot.slane %v497, %v507
  %v509 = vmul.f32 %v504, %v508
  %v510 = vadd.f32 %v495, %v509
  %511 = vset.pattern.permute.xlu0 0
  %512 = vperm.xlu0 %511, %v22
  %v513 = vpop.permute.xlu0 %512
  %vm514 = vcmp.eq.s32.totalorder %v24, %v513
  %v515 = vsel %vm514, %v510, 0.0
  %516 = vadd.xlane.f32.xlu0 %v515
  %v517 = vpop.xlane.xlu0 %516
  %518 = vset.pattern.permute.xlu0 1
  %519 = vperm.xlu0 %518, %v22
  %v520 = vpop.permute.xlu0 %519
  %vm521 = vcmp.eq.s32.totalorder %v24, %v520
  %v522 = vsel %vm521, %v510, 0.0
  %523 = vadd.xlane.f32.xlu0 %v522
  %v524 = vpop.xlane.xlu0 %523
  %525 = vset.pattern.permute.xlu0 2
  %526 = vperm.xlu0 %525, %v22
  %v527 = vpop.permute.xlu0 %526
  %vm528 = vcmp.eq.s32.totalorder %v24, %v527
  %v529 = vsel %vm528, %v510, 0.0
  %530 = vadd.xlane.f32.xlu0 %v529
  %v531 = vpop.xlane.xlu0 %530
  %532 = vset.pattern.permute.xlu0 3
  %533 = vperm.xlu0 %532, %v22
  %v534 = vpop.permute.xlu0 %533
  %vm535 = vcmp.eq.s32.totalorder %v24, %v534
  %v536 = vsel %vm535, %v510, 0.0
  %537 = vadd.xlane.f32.xlu0 %v536
  %v538 = vpop.xlane.xlu0 %537
  %539 = vset.pattern.permute.xlu0 4
  %540 = vperm.xlu0 %539, %v22
  %v541 = vpop.permute.xlu0 %540
  %vm542 = vcmp.eq.s32.totalorder %v24, %v541
  %v543 = vsel %vm542, %v510, 0.0
  %544 = vadd.xlane.f32.xlu0 %v543
  %v545 = vpop.xlane.xlu0 %544
  %546 = vset.pattern.permute.xlu0 5
  %547 = vperm.xlu0 %546, %v22
  %v548 = vpop.permute.xlu0 %547
  %vm549 = vcmp.eq.s32.totalorder %v24, %v548
  %v550 = vsel %vm549, %v510, 0.0
  %551 = vadd.xlane.f32.xlu0 %v550
  %v552 = vpop.xlane.xlu0 %551
  %553 = vset.pattern.permute.xlu0 6
  %554 = vperm.xlu0 %553, %v22
  %v555 = vpop.permute.xlu0 %554
  %vm556 = vcmp.eq.s32.totalorder %v24, %v555
  %v557 = vsel %vm556, %v510, 0.0
  %558 = vadd.xlane.f32.xlu0 %v557
  %v559 = vpop.xlane.xlu0 %558
  %560 = vset.pattern.permute.xlu0 7
  %561 = vperm.xlu0 %560, %v22
  %v562 = vpop.permute.xlu0 %561
  %vm563 = vcmp.eq.s32.totalorder %v24, %v562
  %v564 = vsel %vm563, %v510, 0.0
  %565 = vadd.xlane.f32.xlu0 %v564
  %v566 = vpop.xlane.xlu0 %565
  %567 = vset.pattern.permute.xlu0 8
  %568 = vperm.xlu0 %567, %v22
  %v569 = vpop.permute.xlu0 %568
  %vm570 = vcmp.eq.s32.totalorder %v24, %v569
  %v571 = vsel %vm570, %v510, 0.0
  %572 = vadd.xlane.f32.xlu0 %v571
  %v573 = vpop.xlane.xlu0 %572
  %574 = vset.pattern.permute.xlu0 9
  %575 = vperm.xlu0 %574, %v22
  %v576 = vpop.permute.xlu0 %575
  %vm577 = vcmp.eq.s32.totalorder %v24, %v576
  %v578 = vsel %vm577, %v510, 0.0
  %579 = vadd.xlane.f32.xlu0 %v578
  %v580 = vpop.xlane.xlu0 %579
  %581 = vset.pattern.permute.xlu0 10
  %582 = vperm.xlu0 %581, %v22
  %v583 = vpop.permute.xlu0 %582
  %vm584 = vcmp.eq.s32.totalorder %v24, %v583
  %v585 = vsel %vm584, %v510, 0.0
  %586 = vadd.xlane.f32.xlu0 %v585
  %v587 = vpop.xlane.xlu0 %586
  %588 = vset.pattern.permute.xlu0 11
  %589 = vperm.xlu0 %588, %v22
  %v590 = vpop.permute.xlu0 %589
  %vm591 = vcmp.eq.s32.totalorder %v24, %v590
  %v592 = vsel %vm591, %v510, 0.0
  %593 = vadd.xlane.f32.xlu0 %v592
  %v594 = vpop.xlane.xlu0 %593
  %595 = vset.pattern.permute.xlu0 12
  %596 = vperm.xlu0 %595, %v22
  %v597 = vpop.permute.xlu0 %596
  %vm598 = vcmp.eq.s32.totalorder %v24, %v597
  %v599 = vsel %vm598, %v510, 0.0
  %600 = vadd.xlane.f32.xlu0 %v599
  %v601 = vpop.xlane.xlu0 %600
  %602 = vset.pattern.permute.xlu0 13
  %603 = vperm.xlu0 %602, %v22
  %v604 = vpop.permute.xlu0 %603
  %vm605 = vcmp.eq.s32.totalorder %v24, %v604
  %v606 = vsel %vm605, %v510, 0.0
  %607 = vadd.xlane.f32.xlu0 %v606
  %v608 = vpop.xlane.xlu0 %607
  %609 = vset.pattern.permute.xlu0 14
  %610 = vperm.xlu0 %609, %v22
  %v611 = vpop.permute.xlu0 %610
  %vm612 = vcmp.eq.s32.totalorder %v24, %v611
  %v613 = vsel %vm612, %v510, 0.0
  %614 = vadd.xlane.f32.xlu0 %v613
  %v615 = vpop.xlane.xlu0 %614
  %616 = vset.pattern.permute.xlu0 15
  %617 = vperm.xlu0 %616, %v22
  %v618 = vpop.permute.xlu0 %617
  %vm619 = vcmp.eq.s32.totalorder %v24, %v618
  %v620 = vsel %vm619, %v510, 0.0
  %621 = vadd.xlane.f32.xlu0 %v620
  %v622 = vpop.xlane.xlu0 %621
  %v623 = vmax.f32 %v517, %v524
  %v624 = vmax.f32 %v623, %v531
  %v625 = vmax.f32 %v624, %v538
  %v626 = vmax.f32 %v625, %v545
  %v627 = vmax.f32 %v626, %v552
  %v628 = vmax.f32 %v627, %v559
  %v629 = vmax.f32 %v628, %v566
  %v630 = vmax.f32 %v629, %v573
  %v631 = vmax.f32 %v630, %v580
  %v632 = vmax.f32 %v631, %v587
  %v633 = vmax.f32 %v632, %v594
  %v634 = vmax.f32 %v633, %v601
  %v635 = vmax.f32 %v634, %v608
  %v636 = vmax.f32 %v635, %v615
  %v637 = vmax.f32 %v636, %v622
  %v638 = vsub.f32 %v517, %v637
  %v639 = vmul.f32 %v638, 1.442695
  %v640 = vpow.pop %v639
  %v641 = vadd.f32 %v640, 0.0
  %v642 = vsub.f32 %v524, %v637
  %v643 = vmul.f32 %v642, 1.442695
  %v644 = vpow.pop %v643
  %v645 = vadd.f32 %v641, %v644
  %v646 = vsub.f32 %v531, %v637
  %v647 = vmul.f32 %v646, 1.442695
  %v648 = vpow.pop %v647
  %v649 = vadd.f32 %v645, %v648
  %v650 = vsub.f32 %v538, %v637
  %v651 = vmul.f32 %v650, 1.442695
  %v652 = vpow.pop %v651
  %v653 = vadd.f32 %v649, %v652
  %v654 = vsub.f32 %v545, %v637
  %v655 = vmul.f32 %v654, 1.442695
  %v656 = vpow.pop %v655
  %v657 = vadd.f32 %v653, %v656
  %v658 = vsub.f32 %v552, %v637
  %v659 = vmul.f32 %v658, 1.442695
  %v660 = vpow.pop %v659
  %v661 = vadd.f32 %v657, %v660
  %v662 = vsub.f32 %v559, %v637
  %v663 = vmul.f32 %v662, 1.442695
  %v664 = vpow.pop %v663
  %v665 = vadd.f32 %v661, %v664
  %v666 = vsub.f32 %v566, %v637
  %v667 = vmul.f32 %v666, 1.442695
  %v668 = vpow.pop %v667
  %v669 = vadd.f32 %v665, %v668
  %v670 = vsub.f32 %v573, %v637
  %v671 = vmul.f32 %v670, 1.442695
  %v672 = vpow.pop %v671
  %v673 = vadd.f32 %v669, %v672
  %v674 = vsub.f32 %v580, %v637
  %v675 = vmul.f32 %v674, 1.442695
  %v676 = vpow.pop %v675
  %v677 = vadd.f32 %v673, %v676
  %v678 = vsub.f32 %v587, %v637
  %v679 = vmul.f32 %v678, 1.442695
  %v680 = vpow.pop %v679
  %v681 = vadd.f32 %v677, %v680
  %v682 = vsub.f32 %v594, %v637
  %v683 = vmul.f32 %v682, 1.442695
  %v684 = vpow.pop %v683
  %v685 = vadd.f32 %v681, %v684
  %v686 = vsub.f32 %v601, %v637
  %v687 = vmul.f32 %v686, 1.442695
  %v688 = vpow.pop %v687
  %v689 = vadd.f32 %v685, %v688
  %v690 = vsub.f32 %v608, %v637
  %v691 = vmul.f32 %v690, 1.442695
  %v692 = vpow.pop %v691
  %v693 = vadd.f32 %v689, %v692
  %v694 = vsub.f32 %v615, %v637
  %v695 = vmul.f32 %v694, 1.442695
  %v696 = vpow.pop %v695
  %v697 = vadd.f32 %v693, %v696
  %v698 = vsub.f32 %v622, %v637
  %v699 = vmul.f32 %v698, 1.442695
  %v700 = vpow.pop %v699
  %v701 = vadd.f32 %v697, %v700
  %v702 = vlog2.pop %v701
  %v703 = vmul.f32 %v702, 0.6931472
  %v704 = vadd.f32 %v637, %v703
  %705 = vset.pattern.permute.xlu0 0
  %706 = vperm.xlu0 %705, %v21
  %v707 = vpop.permute.xlu0 %706
  %vm708 = vcmp.eq.s32.totalorder %v24, %v707
  %v709 = vsel %vm708, %v510, 0.0
  %710 = vadd.xlane.f32.xlu0 %v709
  %v711 = vpop.xlane.xlu0 %710
  %v712 = vadd.f32 %v711, 0.0
  %s713 = smul.u32 0, 8
  %v714 = vlaneseq
  %v715 = vshrl.u32 %v714, 7
  %v716 = vstv %s713
  %v717 = vadd.s32 %v716, %v715
  %vm718 = vcmp.lt.s32.totalorder %v717, 8
  %v719 = vsel %vm718, %v704, 0.0
  %vm720 = vcmask 7168
  %v721 = vsel %vm720, %v719, 0.0
  %722 = vadd.xlane.f32.xlu0 %v721
  %v723 = vpop.xlane.xlu0 %722
  %v724 = vrot.slane %v723, 4
  %v725 = vadd.f32 %v723, %v724
  %v726 = vrot.slane %v725, 2
  %v727 = vadd.f32 %v725, %v726
  %v728 = vrot.slane %v727, 1
  %v729 = vadd.f32 %v727, %v728
  %s730 = vtos %v729
  %v731 = vsel %vm718, %v712, 0.0
  %v732 = vsel %vm720, %v731, 0.0
  %733 = vadd.xlane.f32.xlu0 %v732
  %v734 = vpop.xlane.xlu0 %733
  %v735 = vrot.slane %v734, 4
  %v736 = vadd.f32 %v734, %v735
  %v737 = vrot.slane %v736, 2
  %v738 = vadd.f32 %v736, %v737
  %v739 = vrot.slane %v738, 1
  %v740 = vadd.f32 %v738, %v739
  %s741 = vtos %v740
  %vm742 = vcmp.eq.s32.totalorder %v715, 0
  %vm743 = vcmp.eq.s32.totalorder %v715, 1
  %v744 = vstv %s741
  %v745 = vsel %vm743, %v744, 0.0
  %v746 = vstv %s730
  %v747 = vsel %vm742, %v746, %v745
  %748 = vst [vmem:[%s5] sm:$0xff] %v747
  // Predicated region
  $region22: #{skipgram_forward.1} parent=0 // pred_check
    _
  $region23: #{skipgram_forward.1} parent=0 // pred_check_branch
    %750 = sbr.rel (0) target = $region25
  $region24: #{skipgram_forward.1} parent=0 // pred_region
    _
  $region25: #{skipgram_forward.1} parent=0 // pred_fallthru
    _
  // Predicated region
  $region26: #{skipgram_forward.1} parent=0 // pred_check
    _
  $region27: #{skipgram_forward.1} parent=0 // pred_check_branch
    %752 = sbr.rel (0) target = $region29
  $region28: #{skipgram_forward.1} parent=0 // pred_region
    _
  $region29: #{skipgram_forward.1} parent=0 // pred_fallthru
    _

</llo_original>
